<compile_context>
chip_gen: v7x
topology: tpu7x:2x2x1
jax: 0.10.0
libtpu: 0.0.40
codegen_flags: <defaults>
</compile_context>

<pallas_src>
import jax
import jax.numpy as jnp
from jax import lax
from jax.experimental import pallas as pl
from jax.experimental.pallas import tpu as pltpu

HALO = 4  # input-resolution halo per side; HALO >= 4 keeps every rolled/selected
          # column wrap-free inside the chunk window (see ranges in the kernel).


def make_feature_kernel(TL, L2):
  """conv1 -> ReLU -> pool -> conv2 -> ReLU -> pool for one length chunk."""
  TW = TL + 2 * HALO
  TL2 = TL // 2
  # Selection index ranges (why HALO=4 is required):
  #   pool1 picks m1[j] at j = 2q+2, q in [0, TL2+1]  =>  j in [2, TL+4]
  #   m1[j] reads h1[j], h1[j+1]                      =>  h1 idx in [2, TL+5]
  #   h1[j] reads xw[j-1 .. j+1]                      =>  xw idx in [1, TL+6]
  # all wrap-free inside the TW = TL + 8 window.
  assert HALO >= 4

  def feature_kernel(x_ref, w1p_ref, w2p_ref, sel1_ref, sel2_ref, o_ref):
    c = pl.program_id(1)
    start = pl.multiple_of(c * TL, TL)

    # Chunk of the zero-padded waveform with a HALO-sample halo on each side.
    xw = x_ref[:, :, pl.ds(start, TW)][0]                        # (1, TW)

    # conv1 (1->16, k=3, pad=1): broadcast multiply-add on the VPU.
    w1p = w1p_ref[...]                                           # (16,4): taps -1,0,+1, bias
    x_m1 = pltpu.roll(xw, shift=1, axis=1)                       # x[j-1]
    x_p1 = pltpu.roll(xw, shift=TW - 1, axis=1)                  # x[j+1]
    h1 = (w1p[:, 0:1] * x_m1 + w1p[:, 1:2] * xw + w1p[:, 2:3] * x_p1
          + w1p[:, 3:4])                                         # (16, TW)
    h1 = jnp.maximum(h1, 0.0)

    # maxpool(2) at half-res positions [c*TL2-1, c*TL2+TL2+1): pairwise max,
    # then even-column select through the grid-invariant constant sel1.
    m1 = jnp.maximum(h1, pltpu.roll(h1, shift=TW - 1, axis=1))   # m1[j]=max(h1[j],h1[j+1])
    p1 = jnp.dot(m1, sel1_ref[...], preferred_element_type=jnp.float32)  # (16, TL2+2)
    # conv2's zero padding at the true sequence ends: tiny chunk-dependent mask.
    q_glob = lax.broadcasted_iota(jnp.int32, (1, TL2 + 2), 1) + (c * TL2 - 1)
    p1 = p1 * ((q_glob >= 0) & (q_glob < L2)).astype(jnp.float32)

    # conv2 (16->32, k=3, pad=1): one MXU push with the 3 taps stacked on K;
    # shifted tap views built with XLU rolls (wrapped columns sliced off).
    w2p = w2p_ref[...]                                           # (32,49)=[W_-1|W_0|W_+1|b]
    p1_s1 = pltpu.roll(p1, shift=TL2 + 1, axis=1)                # p1[q+1]
    p1_s2 = pltpu.roll(p1, shift=TL2, axis=1)                    # p1[q+2]
    stacked = jnp.concatenate([p1, p1_s1, p1_s2], axis=0)[:, :TL2]   # (48, TL2)
    h2 = (jnp.dot(w2p[:, 0:48], stacked, preferred_element_type=jnp.float32)
          + w2p[:, 48:49])                                       # (32, TL2)
    h2 = jnp.maximum(h2, 0.0)

    # maxpool(2) again (chunk-local; grid-invariant constant sel2).
    m2 = jnp.maximum(h2, pltpu.roll(h2, shift=TL2 - 1, axis=1))
    p2 = jnp.dot(m2, sel2_ref[...], preferred_element_type=jnp.float32)   # (32, TL4)

    o_ref[0] = p2

  return feature_kernel


def fc1_partial_kernel(xf_ref, w_ref, o_ref, acc_ref):
  """K-tiled fc1 partial sums; fc1 weight streamed in its natural (64, K) layout."""
  k = pl.program_id(1)

  @pl.when(k == 0)
  def _():
    acc_ref[...] = jnp.zeros_like(acc_ref)

  # (B, TK) . (64, TK)^T -> (B, 64) with f32 accumulation ("NT" dot_general,
  # same contraction pattern as q@k.T in the flash-attention kernels).
  acc_ref[...] += lax.dot_general(
      xf_ref[...], w_ref[...].astype(jnp.float32),
      dimension_numbers=(((1,), (1,)), ((), ())),
      preferred_element_type=jnp.float32)

  @pl.when(k == pl.num_programs(1) - 1)
  def _():
    o_ref[0] = acc_ref[...]


def prepare_params(params, L, *, chunk=None, tk=None, weight_dtype=jnp.float32):
  """One-time packing of the PyTorch parameters into kernel-ready operands."""
  w1, b1, w2, b2, wf1, bf1, wf2, bf2 = params
  assert L % 4 == 0
  L2, L4 = L // 2, L // 4
  assert wf1.shape == (64, 32 * L4)

  # Length chunk: TL % 512 == 0 keeps TL2/TL4 multiples of 128 (lane-dense
  # stores, aligned pl.ds windows); lengths that don't divide are padded up.
  TL = chunk if chunk is not None else (512 if L >= 512 else L)
  assert TL % 4 == 0
  NC = -(-L // TL)
  L_pad = NC * TL
  TL2, TL4 = TL // 2, TL // 4
  L4_pad = L_pad // 4
  if NC > 1:
    assert TL4 % 128 == 0, "multi-chunk tiling needs TL % 512 == 0 (lane-dense)"

  # Packed conv weights (tiny; stay f32 -- v5e's VPU has no bf16).
  w1p = jnp.concatenate([w1[:, 0, :], b1.reshape(16, 1)], axis=1)          # (16, 4)
  w2p = jnp.concatenate([w2[:, :, 0], w2[:, :, 1], w2[:, :, 2],
                         b2.reshape(32, 1)], axis=1)                       # (32, 49)

  # Grid-invariant maxpool selection matrices (DMA'd once per pallas_call).
  TW = TL + 2 * HALO
  jj = jnp.arange(TW, dtype=jnp.int32)[:, None]
  qq = jnp.arange(TL2 + 2, dtype=jnp.int32)[None, :]
  sel1 = (jj == 2 * qq + 2).astype(jnp.float32)                            # (TW, TL2+2)
  tt = jnp.arange(TL2, dtype=jnp.int32)[:, None]
  rr = jnp.arange(TL4, dtype=jnp.int32)[None, :]
  sel2 = (tt == 2 * rr).astype(jnp.float32)                                # (TL2, TL4)

  # fc1 weight in its NATURAL (64, K) layout (channel-major == PyTorch flatten
  # order == the feature kernel's output order).  If L was padded up, insert
  # zero columns per channel ONCE here.  Optionally cast to bf16 for streaming.
  if L_pad != L:
    wf1k = jnp.pad(wf1.reshape(64, 32, L4),
                   ((0, 0), (0, 0), (0, L4_pad - L4))).reshape(64, 32 * L4_pad)
  else:
    wf1k = wf1
  wf1k = wf1k.astype(weight_dtype)
  K_pad = 32 * L4_pad

  # fc1 K tile: decoupled from TL; multi-MB weight tiles keep HBM saturated.
  if tk is None:
    tk = K_pad
    for cand in range(min(K_pad, 16384), 127, -128):
      if K_pad % cand == 0:
        tk = cand
        break
  assert K_pad % tk == 0 and (tk % 128 == 0 or tk == K_pad)
  NK = K_pad // tk
  P = 2 if (NK >= 2 and NK % 2 == 0) else 1   # 2-way split feeds both v7x cores
  NK2 = NK // P

  geom = dict(L=L, L2=L2, L_pad=L_pad, TL=TL, NC=NC, TL4=TL4,
              L4_pad=L4_pad, K_pad=K_pad, TK=tk, NK=NK, P=P, NK2=NK2)
  return dict(geom=geom, w1p=w1p, w2p=w2p, sel1=sel1, sel2=sel2,
              wf1k=wf1k, bf1=bf1, wf2=wf2, bf2=bf2)


def audio_classifier_forward(x, prepped):
  g = prepped["geom"]
  B, Cin, L = x.shape
  assert Cin == 1 and L == g["L"]
  TL, NC, TL4, L4_pad = g["TL"], g["NC"], g["TL4"], g["L4_pad"]
  L_pad, K_pad, TK, P, NK2 = g["L_pad"], g["K_pad"], g["TK"], g["P"], g["NK2"]
  TW = TL + 2 * HALO
  TL2 = TL // 2
  Lp_tot = L_pad + 2 * HALO

  # Zero-pad the waveform once: HALO halo left, HALO + (L_pad - L) right (the
  # tail padding's features hit zero fc1-weight columns, so they are inert).
  x_pad = jnp.pad(x, ((0, 0), (0, 0), (HALO, HALO + (L_pad - L))))

  feats = pl.pallas_call(
      make_feature_kernel(TL, g["L2"]),
      out_shape=jax.ShapeDtypeStruct((B, 32, L4_pad), jnp.float32),
      grid_spec=pltpu.PrefetchScalarGridSpec(
          num_scalar_prefetch=0,
          grid=(B, NC),
          in_specs=[
              pl.BlockSpec((1, 1, Lp_tot), lambda b, c: (b, 0, 0)),
              pl.BlockSpec((16, 4), lambda b, c: (0, 0)),
              pl.BlockSpec((32, 49), lambda b, c: (0, 0)),
              pl.BlockSpec((TW, TL2 + 2), lambda b, c: (0, 0)),
              pl.BlockSpec((TL2, TL4), lambda b, c: (0, 0)),
          ],
          out_specs=pl.BlockSpec((1, 32, TL4), lambda b, c: (b, 0, c)),
      ),
      compiler_params=pltpu.CompilerParams(
          dimension_semantics=("parallel", "parallel"),
          vmem_limit_bytes=32 * 1024 * 1024),
  )(x_pad, prepped["w1p"], prepped["w2p"], prepped["sel1"], prepped["sel2"])

  # Channel-major flatten == PyTorch flatten order; free (contiguous) reshape.
  xf = feats.reshape(B, K_pad)

  partials = pl.pallas_call(
      fc1_partial_kernel,
      out_shape=jax.ShapeDtypeStruct((P, B, 64), jnp.float32),
      grid_spec=pltpu.PrefetchScalarGridSpec(
          num_scalar_prefetch=0,
          grid=(P, NK2),
          in_specs=[
              pl.BlockSpec((B, TK), lambda p, k: (0, p * NK2 + k)),
              pl.BlockSpec((64, TK), lambda p, k: (0, p * NK2 + k)),
          ],
          out_specs=pl.BlockSpec((1, B, 64), lambda p, k: (p, 0, 0)),
          scratch_shapes=[pltpu.VMEM((B, 64), jnp.float32)],
      ),
      compiler_params=pltpu.CompilerParams(
          dimension_semantics=("parallel", "arbitrary"),
          vmem_limit_bytes=32 * 1024 * 1024),
  )(xf, prepped["wf1k"])

  # Trivial O(B*64) epilogue: combine per-core partials, bias + ReLU, fc2.
  h = jnp.maximum(partials.sum(axis=0) + prepped["bf1"][None, :], 0.0)
  return h @ prepped["wf2"].T + prepped["bf2"][None, :]


def ref_forward(x, params):
  """Pure-JAX reference mirroring the PyTorch forward."""
  w1, b1, w2, b2, wf1, bf1, wf2, bf2 = params
  dn = ('NCH', 'OIH', 'NCH')
  y = lax.conv_general_dilated(x, w1, (1,), ((1, 1),), dimension_numbers=dn)
  y = jnp.maximum(y + b1[None, :, None], 0.0)
  B, C, L = y.shape
  y = y.reshape(B, C, L // 2, 2).max(axis=-1)
  y = lax.conv_general_dilated(y, w2, (1,), ((1, 1),), dimension_numbers=dn)
  y = jnp.maximum(y + b2[None, :, None], 0.0)
  B, C, L = y.shape
  y = y.reshape(B, C, L // 2, 2).max(axis=-1)
  flat = y.reshape(B, -1)
  h = jnp.maximum(flat @ wf1.T + bf1, 0.0)
  return h @ wf2.T + bf2


def _run_case(B, L, chunk, tk, weight_dtype, tol):
  key = jax.random.PRNGKey(0)
  keys = jax.random.split(key, 9)
  s = 0.1
  L4 = L // 4
  w1 = jax.random.normal(keys[0], (16, 1, 3), jnp.float32) * s
  b1 = jax.random.normal(keys[1], (16,), jnp.float32) * s
  w2 = jax.random.normal(keys[2], (32, 16, 3), jnp.float32) * s
  b2 = jax.random.normal(keys[3], (32,), jnp.float32) * s
  wf1 = jax.random.normal(keys[4], (64, 32 * L4), jnp.float32) * s
  bf1 = jax.random.normal(keys[5], (64,), jnp.float32) * s
  wf2 = jax.random.normal(keys[6], (2, 64), jnp.float32) * s
  bf2 = jax.random.normal(keys[7], (2,), jnp.float32) * s
  x = jax.random.normal(keys[8], (B, 1, L), jnp.float32)
  params = (w1, b1, w2, b2, wf1, bf1, wf2, bf2)

  prepped = prepare_params(params, L, chunk=chunk, tk=tk,
                           weight_dtype=weight_dtype)
  out = jax.block_until_ready(audio_classifier_forward(x, prepped))
  ref = ref_forward(x, params)
  assert out.shape == (B, 2), out.shape
  assert jnp.allclose(out, ref, atol=tol, rtol=tol), (out, ref)


if __name__ == "__main__":
  # Case 1: NC=2 halo tiling, lane-dense TL4=128 stores, 2-way parallel K split
  # with 2 accumulation steps per half, strict f32 tolerance.
  _run_case(B=2, L=1024, chunk=512, tk=2048, weight_dtype=jnp.float32, tol=1e-4)
  # Case 2: ragged length (1100 padded to 1536, zero-padded fc1 weight columns)
  # with bf16 fc1 weight streaming (looser tolerance).
  _run_case(B=2, L=1100, chunk=512, tk=4096, weight_dtype=jnp.bfloat16, tol=3e-2)
  print("KERNEL_OK")
</pallas_src>

<mosaic_0001>
module attributes {stable_mosaic.version = 11 : i64} {
  func.func @feature_kernel(%arg0: i32, %arg1: i32, %arg2: memref<1x1x1032xf32, #tpu.memory_space<vmem>>, %arg3: memref<16x4xf32, #tpu.memory_space<vmem>>, %arg4: memref<32x49xf32, #tpu.memory_space<vmem>>, %arg5: memref<520x258xf32, #tpu.memory_space<vmem>>, %arg6: memref<256x128xf32, #tpu.memory_space<vmem>>, %arg7: memref<1x32x128xf32, #tpu.memory_space<vmem>>) attributes {dimension_semantics = [#tpu.dimension_semantics<parallel>, #tpu.dimension_semantics<parallel>], iteration_bounds = array<i64: 2, 2>, scalar_prefetch = 0 : i64, scratch_operands = 0 : i64, tpu.core_type = #tpu.core_type<tc>, window_params = [{transform_indices = @transform_0, window_bounds = array<i64: 1, 1, 1032>}, {pipeline_mode = #tpu.pipeline_mode<synchronous>, transform_indices = @transform_1, window_bounds = array<i64: 16, 4>}, {pipeline_mode = #tpu.pipeline_mode<synchronous>, transform_indices = @transform_2, window_bounds = array<i64: 32, 49>}, {pipeline_mode = #tpu.pipeline_mode<synchronous>, transform_indices = @transform_3, window_bounds = array<i64: 520, 258>}, {pipeline_mode = #tpu.pipeline_mode<synchronous>, transform_indices = @transform_4, window_bounds = array<i64: 256, 128>}, {transform_indices = @transform_5, window_bounds = array<i64: 1, 32, 128>}]} {
    %c512_i32 = arith.constant 512 : i32
    %0 = arith.muli %arg1, %c512_i32 : i32
    %1 = tpu.assume_multiple %0, 512 : i32
    %c0 = arith.constant 0 : index
    %c0_0 = arith.constant 0 : index
    %2 = arith.index_cast %1 : i32 to index
    %3 = vector.load %arg2[%c0, %c0_0, %2] : memref<1x1x1032xf32, #tpu.memory_space<vmem>>, vector<1x1x520xf32>
    %4 = vector.shape_cast %3 : vector<1x1x520xf32> to vector<1x520xf32>
    %c0_1 = arith.constant 0 : index
    %c0_2 = arith.constant 0 : index
    %5 = vector.load %arg3[%c0_1, %c0_2] : memref<16x4xf32, #tpu.memory_space<vmem>>, vector<16x4xf32>
    %c1_i32 = arith.constant 1 : i32
    %6 = tpu.dynamic_rotate %4 by %c1_i32 dim 1 : vector<1x520xf32>, i32 -> vector<1x520xf32>
    %c519_i32 = arith.constant 519 : i32
    %7 = tpu.dynamic_rotate %4 by %c519_i32 dim 1 : vector<1x520xf32>, i32 -> vector<1x520xf32>
    %8 = vector.extract_strided_slice %5 {offsets = [0, 0], sizes = [16, 1], strides = [1, 1]} : vector<16x4xf32> to vector<16x1xf32>
    %9 = vector.broadcast %8 : vector<16x1xf32> to vector<16x520xf32>
    %10 = vector.broadcast %6 : vector<1x520xf32> to vector<16x520xf32>
    %11 = arith.mulf %9, %10 : vector<16x520xf32>
    %12 = vector.extract_strided_slice %5 {offsets = [0, 1], sizes = [16, 1], strides = [1, 1]} : vector<16x4xf32> to vector<16x1xf32>
    %13 = vector.broadcast %12 : vector<16x1xf32> to vector<16x520xf32>
    %14 = vector.broadcast %4 : vector<1x520xf32> to vector<16x520xf32>
    %15 = arith.mulf %13, %14 : vector<16x520xf32>
    %16 = arith.addf %11, %15 : vector<16x520xf32>
    %17 = vector.extract_strided_slice %5 {offsets = [0, 2], sizes = [16, 1], strides = [1, 1]} : vector<16x4xf32> to vector<16x1xf32>
    %18 = vector.broadcast %17 : vector<16x1xf32> to vector<16x520xf32>
    %19 = vector.broadcast %7 : vector<1x520xf32> to vector<16x520xf32>
    %20 = arith.mulf %18, %19 : vector<16x520xf32>
    %21 = arith.addf %16, %20 : vector<16x520xf32>
    %22 = vector.extract_strided_slice %5 {offsets = [0, 3], sizes = [16, 1], strides = [1, 1]} : vector<16x4xf32> to vector<16x1xf32>
    %23 = vector.broadcast %22 : vector<16x1xf32> to vector<16x520xf32>
    %24 = arith.addf %21, %23 : vector<16x520xf32>
    %cst = arith.constant 0.000000e+00 : f32
    %25 = vector.broadcast %cst : f32 to vector<16x520xf32>
    %26 = arith.maximumf %24, %25 : vector<16x520xf32>
    %c519_i32_3 = arith.constant 519 : i32
    %27 = tpu.dynamic_rotate %26 by %c519_i32_3 dim 1 : vector<16x520xf32>, i32 -> vector<16x520xf32>
    %28 = arith.maximumf %26, %27 : vector<16x520xf32>
    %c0_4 = arith.constant 0 : index
    %c0_5 = arith.constant 0 : index
    %29 = vector.load %arg5[%c0_4, %c0_5] : memref<520x258xf32, #tpu.memory_space<vmem>>, vector<520x258xf32>
    %cst_6 = arith.constant dense<0.000000e+00> : vector<16x258xf32>
    %30 = tpu.matmul %28, %29, %cst_6 {dimension_numbers = #tpu.dot_dimension_numbers<[1], [0], [0], [1], [0, 0, 1, 1], [], []>} : vector<16x520xf32>, vector<520x258xf32>, vector<16x258xf32> -> vector<16x258xf32>
    %31 = tpu.iota {dimensions = array<i32: 1>} : vector<1x258xi32>
    %c256_i32 = arith.constant 256 : i32
    %32 = arith.muli %arg1, %c256_i32 : i32
    %c1_i32_7 = arith.constant 1 : i32
    %33 = arith.subi %32, %c1_i32_7 : i32
    %34 = vector.broadcast %33 : i32 to vector<1x258xi32>
    %35 = arith.addi %31, %34 : vector<1x258xi32>
    %c0_i32 = arith.constant 0 : i32
    %36 = vector.broadcast %c0_i32 : i32 to vector<1x258xi32>
    %37 = arith.cmpi sge, %35, %36 : vector<1x258xi32>
    %c512_i32_8 = arith.constant 512 : i32
    %38 = vector.broadcast %c512_i32_8 : i32 to vector<1x258xi32>
    %39 = arith.cmpi slt, %35, %38 : vector<1x258xi32>
    %40 = arith.andi %37, %39 : vector<1x258xi1>
    %41 = arith.extui %40 : vector<1x258xi1> to vector<1x258xi32>
    %42 = arith.sitofp %41 : vector<1x258xi32> to vector<1x258xf32>
    %43 = vector.broadcast %42 : vector<1x258xf32> to vector<16x258xf32>
    %44 = arith.mulf %30, %43 : vector<16x258xf32>
    %c0_9 = arith.constant 0 : index
    %c0_10 = arith.constant 0 : index
    %45 = vector.load %arg4[%c0_9, %c0_10] : memref<32x49xf32, #tpu.memory_space<vmem>>, vector<32x49xf32>
    %c257_i32 = arith.constant 257 : i32
    %46 = tpu.dynamic_rotate %44 by %c257_i32 dim 1 : vector<16x258xf32>, i32 -> vector<16x258xf32>
    %c256_i32_11 = arith.constant 256 : i32
    %47 = tpu.dynamic_rotate %44 by %c256_i32_11 dim 1 : vector<16x258xf32>, i32 -> vector<16x258xf32>
    %48 = tpu.concatenate %44, %46, %47 in 0 : vector<16x258xf32>, vector<16x258xf32>, vector<16x258xf32> -> vector<48x258xf32>
    %49 = vector.extract_strided_slice %48 {offsets = [0, 0], sizes = [48, 256], strides = [1, 1]} : vector<48x258xf32> to vector<48x256xf32>
    %50 = vector.extract_strided_slice %45 {offsets = [0, 0], sizes = [32, 48], strides = [1, 1]} : vector<32x49xf32> to vector<32x48xf32>
    %cst_12 = arith.constant dense<0.000000e+00> : vector<32x256xf32>
    %51 = tpu.matmul %50, %49, %cst_12 {dimension_numbers = #tpu.dot_dimension_numbers<[1], [0], [0], [1], [0, 0, 1, 1], [], []>} : vector<32x48xf32>, vector<48x256xf32>, vector<32x256xf32> -> vector<32x256xf32>
    %52 = vector.extract_strided_slice %45 {offsets = [0, 48], sizes = [32, 1], strides = [1, 1]} : vector<32x49xf32> to vector<32x1xf32>
    %53 = vector.broadcast %52 : vector<32x1xf32> to vector<32x256xf32>
    %54 = arith.addf %51, %53 : vector<32x256xf32>
    %cst_13 = arith.constant 0.000000e+00 : f32
    %55 = vector.broadcast %cst_13 : f32 to vector<32x256xf32>
    %56 = arith.maximumf %54, %55 : vector<32x256xf32>
    %c255_i32 = arith.constant 255 : i32
    %57 = tpu.dynamic_rotate %56 by %c255_i32 dim 1 : vector<32x256xf32>, i32 -> vector<32x256xf32>
    %58 = arith.maximumf %56, %57 : vector<32x256xf32>
    %c0_14 = arith.constant 0 : index
    %c0_15 = arith.constant 0 : index
    %59 = vector.load %arg6[%c0_14, %c0_15] : memref<256x128xf32, #tpu.memory_space<vmem>>, vector<256x128xf32>
    %cst_16 = arith.constant dense<0.000000e+00> : vector<32x128xf32>
    %60 = tpu.matmul %58, %59, %cst_16 {dimension_numbers = #tpu.dot_dimension_numbers<[1], [0], [0], [1], [0, 0, 1, 1], [], []>} : vector<32x256xf32>, vector<256x128xf32>, vector<32x128xf32> -> vector<32x128xf32>
    %c0_17 = arith.constant 0 : index
    %c0_18 = arith.constant 0 : index
    %c0_19 = arith.constant 0 : index
    %61 = vector.load %arg7[%c0_17, %c0_18, %c0_19] : memref<1x32x128xf32, #tpu.memory_space<vmem>>, vector<1x32x128xf32>
    %62 = vector.shape_cast %61 : vector<1x32x128xf32> to vector<32x128xf32>
    %63 = vector.shape_cast %60 : vector<32x128xf32> to vector<1x32x128xf32>
    tpu.vector_store %arg7[%c0_17, %c0_18, %c0_19], %63 {strides = array<i32>} : memref<1x32x128xf32, #tpu.memory_space<vmem>>, vector<1x32x128xf32>,
    return
  }
  func.func @transform_0(%arg0: i32, %arg1: i32) -> (i32, i32, i32) {
    %c0_i32 = arith.constant 0 : i32
    %c0_i32_0 = arith.constant 0 : i32
    %c0_i32_1 = arith.constant 0 : i32
    return %arg0, %c0_i32, %c0_i32_0 : i32, i32, i32
  }
  func.func @transform_1(%arg0: i32, %arg1: i32) -> (i32, i32) {
    %c0_i32 = arith.constant 0 : i32
    %c0_i32_0 = arith.constant 0 : i32
    %c0_i32_1 = arith.constant 0 : i32
    return %c0_i32, %c0_i32_0 : i32, i32
  }
  func.func @transform_2(%arg0: i32, %arg1: i32) -> (i32, i32) {
    %c0_i32 = arith.constant 0 : i32
    %c0_i32_0 = arith.constant 0 : i32
    %c0_i32_1 = arith.constant 0 : i32
    return %c0_i32, %c0_i32_0 : i32, i32
  }
  func.func @transform_3(%arg0: i32, %arg1: i32) -> (i32, i32) {
    %c0_i32 = arith.constant 0 : i32
    %c0_i32_0 = arith.constant 0 : i32
    %c0_i32_1 = arith.constant 0 : i32
    return %c0_i32, %c0_i32_0 : i32, i32
  }
  func.func @transform_4(%arg0: i32, %arg1: i32) -> (i32, i32) {
    %c0_i32 = arith.constant 0 : i32
    %c0_i32_0 = arith.constant 0 : i32
    %c0_i32_1 = arith.constant 0 : i32
    return %c0_i32, %c0_i32_0 : i32, i32
  }
  func.func @transform_5(%arg0: i32, %arg1: i32) -> (i32, i32, i32) {
    %c0_i32 = arith.constant 0 : i32
    %c0_i32_0 = arith.constant 0 : i32
    return %arg0, %c0_i32, %arg1 : i32, i32, i32
  }
}

</mosaic_0001>

<llo_original>
// kernel: tpu_custom_call.1
$region0: #{tpu_custom_call.1}
  #allocation0 [shape = 'u32[]', space=smem, size = 0x4, offset = 0x4, fixed_abs, tag = 'smem constant byte address 0x4 - core index']
  #allocation1 [shape = 'u32[144,128]{1,0:T(1,128)}', space=vmem, size = 0x12000, scoped, tag = 'internal scratch']
  %s0 = inlined_call_operand.vmem [shape: f32[2,1,1032], index: 0, kind: input, shape index: {}]
  %s1 = inlined_call_operand.vmem [shape: f32[16,4], index: 1, kind: input, shape index: {}]
  %s2 = inlined_call_operand.vmem [shape: f32[32,49], index: 2, kind: input, shape index: {}]
  %s3 = inlined_call_operand.vmem [shape: f32[520,258], index: 3, kind: input, shape index: {}]
  %s4 = inlined_call_operand.vmem [shape: f32[256,128], index: 4, kind: input, shape index: {}]
  %s5 = inlined_call_operand.hbm [shape: f32[2,32,256], index: 5, kind: output, shape index: {}]
  %s6 = sld [smem:[#allocation0]]
  $region53: #{tpu_custom_call.1} parent=0
    _
  %s8 = ssub.s32 1, %s6
  %s9 = scalar_select 0, %s8, %s6
  $region1: #{tpu_custom_call.1} parent=0
    #allocation2 [shape = 'u8[32768]{0}', space=vmem, size = 0x8000, scoped, tag = 'output window, operand 0']
    #allocation3 [shape = 's32[2]{0}', space=sflag, size = 0x8, scoped, tag = 'scoped memory for tpu_custom_call.1']
    %10 = vsyncpa [#allocation3], 0
    %s11 = scalar_lea.sflag [#allocation3], 1
    %12 = vsyncpa %s11, 0
    loop: start=0, step=1, limit=6
    $region2: #{tpu_custom_call.1} parent=1 // loop_pre_header
      _
    $region3: #{tpu_custom_call.1} parent=1 // loop_header
      %s14 = sphi 0, %s18
      %p15 = scmp.ge.s32.totalorder %s14, 6
      %s21 = sphi 0, %s33
      %s22 = sphi 0, %s29
      %s23 = sphi 0, %s21
      %s24 = sphi 0, %s22
      %s25 = sphi 0, %s23
      %s26 = sphi 0, %s24
      %s36 = sphi 0, %s38
      %s39 = sphi 0, %s36
      %s40 = sphi 0, %s39
      %s56 = sphi 0, %s40
      %s60 = sphi 0, %s60
      %s62 = sphi 0, %s60
      %s63 = sphi 0, %s62
      %s77 = sphi 0, %s63
      %s81 = sphi 0, %s81
      %s83 = sphi 0, %s81
      %s84 = sphi 0, %s83
      %s98 = sphi 0, %s84
      %s102 = sphi 0, %s102
      %s104 = sphi 0, %s102
      %s105 = sphi 0, %s104
      %s119 = sphi 0, %s105
      %s123 = sphi 0, %s123
      %s125 = sphi 0, %s123
      %s126 = sphi 0, %s125
      %s140 = sphi 0, %s126
      %s148 = sphi 0, %s150
      %s151 = sphi 0, %s148
      %s152 = sphi 0, %s151
      %s168 = sphi 0, %s152
    $region4: #{tpu_custom_call.1} parent=1 // loop_header_branch
      %17 = sbr.rel (%p15) target = $region8
    $region5: #{tpu_custom_call.1} parent=1 // loop_body
      %s19 = ssub.s32 %s14, 1
      %s20 = ssub.s32 %s14, 2
      %s27 = sadd.s32 1, %s22
      %p28 = scmp.ge.s32.totalorder %s27, 2
      %s29 = scalar_select %p28, 0, %s27
      %s30 = sadd.s32 1, %s21
      %s31 = scalar_select %p28, %s30, %s21
      %p32 = scmp.ge.s32.totalorder %s31, 2
      %s33 = scalar_select %p32, 0, %s31
      %s34 = ssub.s32 %s21, %s33
      %p35 = scmp.eq.s32.totalorder %s34, 0
      %s37 = sadd.s32 %s36, 1
      %s38 = scalar_select %p35, %s36, %s37
      %p41 = pneg %p35
      %p42 = scmp.eq.s32.totalorder %s14, 3
      %p43 = por %p41, %p42
      %p44 = scmp.ne.s32.totalorder %s36, %s39
      %p45 = scmp.eq.s32.totalorder %s14, 0
      %p46 = por %p44, %p45
      %p47 = scmp.ne.s32.totalorder %s36, %s39
      %p48 = scmp.eq.s32.totalorder %s19, 3
      %p49 = por %p47, %p48
      %p50 = scmp.ne.s32.totalorder %s39, %s40
      %p51 = scmp.eq.s32.totalorder %s19, 0
      %p52 = por %p50, %p51
      %p53 = scmp.ne.s32.totalorder %s39, %s40
      %p54 = scmp.eq.s32.totalorder %s20, 3
      %p55 = por %p53, %p54
      %p57 = scmp.ne.s32.totalorder %s40, %s56
      %p58 = scmp.eq.s32.totalorder %s20, 0
      %p59 = por %p57, %p58
      %s61 = sadd.s32 %s60, 1
      %p64 = scmp.eq.s32.totalorder %s14, 3
      %p65 = scmp.ne.s32.totalorder %s60, %s62
      %p66 = scmp.eq.s32.totalorder %s14, 0
      %p67 = por %p65, %p66
      %p68 = scmp.ne.s32.totalorder %s60, %s62
      %p69 = scmp.eq.s32.totalorder %s19, 3
      %p70 = por %p68, %p69
      %p71 = scmp.ne.s32.totalorder %s62, %s63
      %p72 = scmp.eq.s32.totalorder %s19, 0
      %p73 = por %p71, %p72
      %p74 = scmp.ne.s32.totalorder %s62, %s63
      %p75 = scmp.eq.s32.totalorder %s20, 3
      %p76 = por %p74, %p75
      %p78 = scmp.ne.s32.totalorder %s63, %s77
      %p79 = scmp.eq.s32.totalorder %s20, 0
      %p80 = por %p78, %p79
      %s82 = sadd.s32 %s81, 1
      %p85 = scmp.eq.s32.totalorder %s14, 3
      %p86 = scmp.ne.s32.totalorder %s81, %s83
      %p87 = scmp.eq.s32.totalorder %s14, 0
      %p88 = por %p86, %p87
      %p89 = scmp.ne.s32.totalorder %s81, %s83
      %p90 = scmp.eq.s32.totalorder %s19, 3
      %p91 = por %p89, %p90
      %p92 = scmp.ne.s32.totalorder %s83, %s84
      %p93 = scmp.eq.s32.totalorder %s19, 0
      %p94 = por %p92, %p93
      %p95 = scmp.ne.s32.totalorder %s83, %s84
      %p96 = scmp.eq.s32.totalorder %s20, 3
      %p97 = por %p95, %p96
      %p99 = scmp.ne.s32.totalorder %s84, %s98
      %p100 = scmp.eq.s32.totalorder %s20, 0
      %p101 = por %p99, %p100
      %s103 = sadd.s32 %s102, 1
      %p106 = scmp.eq.s32.totalorder %s14, 3
      %p107 = scmp.ne.s32.totalorder %s102, %s104
      %p108 = scmp.eq.s32.totalorder %s14, 0
      %p109 = por %p107, %p108
      %p110 = scmp.ne.s32.totalorder %s102, %s104
      %p111 = scmp.eq.s32.totalorder %s19, 3
      %p112 = por %p110, %p111
      %p113 = scmp.ne.s32.totalorder %s104, %s105
      %p114 = scmp.eq.s32.totalorder %s19, 0
      %p115 = por %p113, %p114
      %p116 = scmp.ne.s32.totalorder %s104, %s105
      %p117 = scmp.eq.s32.totalorder %s20, 3
      %p118 = por %p116, %p117
      %p120 = scmp.ne.s32.totalorder %s105, %s119
      %p121 = scmp.eq.s32.totalorder %s20, 0
      %p122 = por %p120, %p121
      %s124 = sadd.s32 %s123, 1
      %p127 = scmp.eq.s32.totalorder %s14, 3
      %p128 = scmp.ne.s32.totalorder %s123, %s125
      %p129 = scmp.eq.s32.totalorder %s14, 0
      %p130 = por %p128, %p129
      %p131 = scmp.ne.s32.totalorder %s123, %s125
      %p132 = scmp.eq.s32.totalorder %s19, 3
      %p133 = por %p131, %p132
      %p134 = scmp.ne.s32.totalorder %s125, %s126
      %p135 = scmp.eq.s32.totalorder %s19, 0
      %p136 = por %p134, %p135
      %p137 = scmp.ne.s32.totalorder %s125, %s126
      %p138 = scmp.eq.s32.totalorder %s20, 3
      %p139 = por %p137, %p138
      %p141 = scmp.ne.s32.totalorder %s126, %s140
      %p142 = scmp.eq.s32.totalorder %s20, 0
      %p143 = por %p141, %p142
      %s144 = ssub.s32 %s21, %s33
      %s145 = ssub.s32 %s22, %s29
      %s146 = sor.u32 %s144, %s145
      %p147 = scmp.eq.s32.totalorder %s146, 0
      %s149 = sadd.s32 %s148, 1
      %s150 = scalar_select %p147, %s148, %s149
      %p153 = pneg %p147
      %p154 = scmp.eq.s32.totalorder %s14, 3
      %p155 = por %p153, %p154
      %p156 = scmp.ne.s32.totalorder %s148, %s151
      %p157 = scmp.eq.s32.totalorder %s14, 0
      %p158 = por %p156, %p157
      %p159 = scmp.ne.s32.totalorder %s148, %s151
      %p160 = scmp.eq.s32.totalorder %s19, 3
      %p161 = por %p159, %p160
      %p162 = scmp.ne.s32.totalorder %s151, %s152
      %p163 = scmp.eq.s32.totalorder %s19, 0
      %p164 = por %p162, %p163
      %p165 = scmp.ne.s32.totalorder %s151, %s152
      %p166 = scmp.eq.s32.totalorder %s20, 3
      %p167 = por %p165, %p166
      %p169 = scmp.ne.s32.totalorder %s152, %s168
      %p170 = scmp.eq.s32.totalorder %s20, 0
      %p171 = por %p169, %p170
      %p172 = scmp.le.s32.totalorder 1, %s14
      %p173 = scmp.lt.s32.totalorder %s14, 5
      %p174 = pnand %p172, %p173
      %p175 = pneg %p174
      // Predicated region
      $region9: #{tpu_custom_call.1} parent=5 // pred_check
        _
      $region10: #{tpu_custom_call.1} parent=5 // pred_check_branch
        %177 = sbr.rel (%p174) target = $region12
      $region11: #{tpu_custom_call.1} parent=5 // pred_region
        %s178 = ssub.s32 %s14, 1
        // Predicated region
        $region13: #{tpu_custom_call.1} parent=11 // pred_check
          %p179 = pneg %p73
        $region14: #{tpu_custom_call.1} parent=11 // pred_check_branch
          %181 = sbr.rel (%p179) target = $region16
        $region15: #{tpu_custom_call.1} parent=11 // pred_region
          _
        $region16: #{tpu_custom_call.1} parent=11 // pred_fallthru
          _
        // Predicated region
        $region17: #{tpu_custom_call.1} parent=11 // pred_check
          %p182 = pneg %p94
        $region18: #{tpu_custom_call.1} parent=11 // pred_check_branch
          %184 = sbr.rel (%p182) target = $region20
        $region19: #{tpu_custom_call.1} parent=11 // pred_region
          _
        $region20: #{tpu_custom_call.1} parent=11 // pred_fallthru
          _
        // Predicated region
        $region21: #{tpu_custom_call.1} parent=11 // pred_check
          %p185 = pneg %p115
        $region22: #{tpu_custom_call.1} parent=11 // pred_check_branch
          %187 = sbr.rel (%p185) target = $region24
        $region23: #{tpu_custom_call.1} parent=11 // pred_region
          _
        $region24: #{tpu_custom_call.1} parent=11 // pred_fallthru
          _
        // Predicated region
        $region25: #{tpu_custom_call.1} parent=11 // pred_check
          %p188 = pneg %p136
        $region26: #{tpu_custom_call.1} parent=11 // pred_check_branch
          %190 = sbr.rel (%p188) target = $region28
        $region27: #{tpu_custom_call.1} parent=11 // pred_region
          _
        $region28: #{tpu_custom_call.1} parent=11 // pred_fallthru
          _
      $region12: #{tpu_custom_call.1} parent=5 // pred_fallthru
        _
      %p191 = scmp.lt.s32.totalorder %s14, 4
      // Predicated region
      $region29: #{tpu_custom_call.1} parent=5 // pred_check
        %p192 = pneg %p191
      $region30: #{tpu_custom_call.1} parent=5 // pred_check_branch
        %194 = sbr.rel (%p192) target = $region32
      $region31: #{tpu_custom_call.1} parent=5 // pred_region
        // Predicated region
        $region33: #{tpu_custom_call.1} parent=31 // pred_check
          %p195 = pneg %p46
        $region34: #{tpu_custom_call.1} parent=31 // pred_check_branch
          %197 = sbr.rel (%p195) target = $region36
        $region35: #{tpu_custom_call.1} parent=31 // pred_region
          %p198 = scmp.lt.s32.totalorder %s21, 1
          %s199 = scalar_select %p198, %s21, 1
          %s200 = smul.addr %s199, 9
          %s201 = scalar_lea.vmem %s0, %s200
        $region36: #{tpu_custom_call.1} parent=31 // pred_fallthru
          _
      $region32: #{tpu_custom_call.1} parent=5 // pred_fallthru
        _
      %p202 = scmp.le.s32.totalorder 1, %s14
      %p203 = scmp.lt.s32.totalorder %s14, 5
      %p204 = pnand %p202, %p203
      %p205 = pneg %p204
      // Predicated region
      $region37: #{tpu_custom_call.1} parent=5 // pred_check
        _
      $region38: #{tpu_custom_call.1} parent=5 // pred_check_branch
        %207 = sbr.rel (%p204) target = $region40
      $region39: #{tpu_custom_call.1} parent=5 // pred_region
        %s208 = ssub.s32 %s14, 1
        %p209 = scmp.lt.s32.totalorder %s23, 1
        %s210 = scalar_select %p209, %s23, 1
        %s211 = smul.addr %s210, 9
        %s212 = scalar_lea.vmem %s0, %s211
        %p213 = pneg %p52
        %p214 = pneg %p49
        %p215 = pneg %p73
        %p216 = pneg %p70
        %p217 = pneg %p94
        %p218 = pneg %p91
        %p219 = pneg %p115
        %p220 = pneg %p112
        %p221 = pneg %p136
        %p222 = pneg %p133
        %p223 = pneg %p164
        %p224 = pneg %p161
        %s225 = sand.u32 %s151, 1
        %s226 = scalar_lea.sflag [#allocation3], %s225
        %s227 = sand.u32 %s151, 1
        %s228 = smul.addr %s227, 32
        %s229 = scalar_lea.vmem [#allocation2], %s228
        %p230 = scmp.lt.s32.totalorder %s23, 1
        %s231 = scalar_select %p230, %s23, 1
        %s232 = smul.addr %s231, 9
        %s233 = scalar_lea.vmem %s0, %s232
        %s234 = smul.u32 %s24, 512
        %s235 = sshra.s32 %s234, 7
        %s236 = sand.u32 %s234, 127
        %s237 = scalar_lea.vmem %s233, %s235
        %v238 = vld [vmem:[%s237] sm:$0x1f]
        %v239 = vld [vmem:[%s1] sm:$0xff]
        %v240 = vld [vmem:[%s1 + $0x8] sm:$0xff]
        %v242 = vlaneseq
        %v243 = vshrl.u32 %v242, 7
        %v244 = vsub.s32 0, %v243
        %v245 = vrot.slane %v238, %v244
        %v246 = vlaneseq
        %v247 = vshrl.u32 %v246, 7
        %v248 = vsub.s32 1, %v247
        %v249 = vrot.slane %v238, %v248
        %v250 = vlaneseq
        %v251 = vshrl.u32 %v250, 7
        %v252 = vsub.s32 2, %v251
        %v253 = vrot.slane %v238, %v252
        %v254 = vlaneseq
        %v255 = vshrl.u32 %v254, 7
        %v256 = vsub.s32 3, %v255
        %v257 = vrot.slane %v238, %v256
        %v258 = vlaneseq
        %v259 = vshrl.u32 %v258, 7
        %v260 = vsub.s32 4, %v259
        %v261 = vrot.slane %v238, %v260
        %vm267 = vcmask 1047616
        %268 = vrot.lane.b32.xlu0 %v245, 8
        %v269 = vpop.permute.xlu0 %268
        %v270 = vsel %vm267, %v269, %v261
        %271 = vrot.lane.b32.xlu0 %v249, 8
        %v272 = vpop.permute.xlu0 %271
        %273 = vrot.lane.b32.xlu0 %v253, 8
        %v274 = vpop.permute.xlu0 %273
        %275 = vrot.lane.b32.xlu0 %v257, 8
        %v276 = vpop.permute.xlu0 %275
        %277 = vrot.lane.b32.xlu0 %v270, 8
        %v278 = vpop.permute.xlu0 %277
        %v279 = vsel %vm267, %v272, %v269
        %v280 = vsel %vm267, %v274, %v272
        %v281 = vsel %vm267, %v276, %v274
        %v282 = vsel %vm267, %v278, %v276
        %284 = vset.pattern.permute.xlu0 0
        %285 = vperm.xlu0 %284, %v239
        %v286 = vpop.permute.xlu0 %285
        %289 = vset.pattern.permute.xlu0 0
        %290 = vperm.xlu0 %289, %v240
        %v291 = vpop.permute.xlu0 %290
        %v293 = vlaneseq
        %v294 = vshrl.u32 %v293, 7
        %v295 = vsub.s32 0, %v294
        %v296 = vrot.slane %v270, %v295
        %v297 = vlaneseq
        %v298 = vshrl.u32 %v297, 7
        %v299 = vsub.s32 0, %v298
        %v300 = vrot.slane %v279, %v299
        %v301 = vlaneseq
        %v302 = vshrl.u32 %v301, 7
        %v303 = vsub.s32 0, %v302
        %v304 = vrot.slane %v280, %v303
        %v305 = vlaneseq
        %v306 = vshrl.u32 %v305, 7
        %v307 = vsub.s32 0, %v306
        %v308 = vrot.slane %v281, %v307
        %v309 = vlaneseq
        %v310 = vshrl.u32 %v309, 7
        %v311 = vsub.s32 0, %v310
        %v312 = vrot.slane %v282, %v311
        %v313 = vmul.f32 %v286, %v296
        %v314 = vmul.f32 %v286, %v300
        %v315 = vmul.f32 %v286, %v304
        %v316 = vmul.f32 %v286, %v308
        %v317 = vmul.f32 %v286, %v312
        %v318 = vmul.f32 %v291, %v296
        %v319 = vmul.f32 %v291, %v300
        %v320 = vmul.f32 %v291, %v304
        %v321 = vmul.f32 %v291, %v308
        %v322 = vmul.f32 %v291, %v312
        %323 = vset.pattern.permute.xlu0 1
        %324 = vperm.xlu0 %323, %v239
        %v325 = vpop.permute.xlu0 %324
        %327 = vset.pattern.permute.xlu0 1
        %328 = vperm.xlu0 %327, %v240
        %v329 = vpop.permute.xlu0 %328
        %v331 = vmul.f32 %v325, %v245
        %v332 = vmul.f32 %v325, %v249
        %v333 = vmul.f32 %v325, %v253
        %v334 = vmul.f32 %v325, %v257
        %v335 = vmul.f32 %v325, %v261
        %v336 = vmul.f32 %v329, %v245
        %v337 = vmul.f32 %v329, %v249
        %v338 = vmul.f32 %v329, %v253
        %v339 = vmul.f32 %v329, %v257
        %v340 = vmul.f32 %v329, %v261
        %351 = vrot.lane.b32.xlu0 %v331, 7
        %v352 = vpop.permute.xlu0 %351
        %353 = vrot.lane.b32.xlu0 %v332, 7
        %v354 = vpop.permute.xlu0 %353
        %355 = vrot.lane.b32.xlu0 %v333, 7
        %v356 = vpop.permute.xlu0 %355
        %357 = vrot.lane.b32.xlu0 %v334, 7
        %v358 = vpop.permute.xlu0 %357
        %359 = vrot.lane.b32.xlu0 %v335, 7
        %v360 = vpop.permute.xlu0 %359
        %361 = vrot.lane.b32.xlu0 %v336, 7
        %v362 = vpop.permute.xlu0 %361
        %363 = vrot.lane.b32.xlu0 %v337, 7
        %v364 = vpop.permute.xlu0 %363
        %365 = vrot.lane.b32.xlu0 %v338, 7
        %v366 = vpop.permute.xlu0 %365
        %367 = vrot.lane.b32.xlu0 %v339, 7
        %v368 = vpop.permute.xlu0 %367
        %369 = vrot.lane.b32.xlu0 %v340, 7
        %v370 = vpop.permute.xlu0 %369
        %vm371 = vcmask 56320
        %v372 = vsel %vm371, %v352, %v354
        %v373 = vsel %vm371, %v354, %v356
        %v374 = vsel %vm371, %v356, %v358
        %v375 = vsel %vm371, %v358, %v360
        %v376 = vsel %vm371, %v362, %v364
        %v377 = vsel %vm371, %v364, %v366
        %v378 = vsel %vm371, %v366, %v368
        %v379 = vsel %vm371, %v368, %v370
        %v390 = vadd.f32 %v313, %v352
        %v391 = vadd.f32 %v314, %v372
        %v392 = vadd.f32 %v315, %v373
        %v393 = vadd.f32 %v316, %v374
        %v394 = vadd.f32 %v317, %v375
        %v395 = vadd.f32 %v318, %v362
        %v396 = vadd.f32 %v319, %v376
        %v397 = vadd.f32 %v320, %v377
        %v398 = vadd.f32 %v321, %v378
        %v399 = vadd.f32 %v322, %v379
        %400 = vset.pattern.permute.xlu0 2
        %401 = vperm.xlu0 %400, %v239
        %v402 = vpop.permute.xlu0 %401
        %404 = vset.pattern.permute.xlu0 2
        %405 = vperm.xlu0 %404, %v240
        %v406 = vpop.permute.xlu0 %405
        %v408 = vlaneseq
        %v409 = vshrl.u32 %v408, 7
        %v410 = vsub.s32 0, %v409
        %v411 = vrot.slane %v245, %v410
        %v412 = vlaneseq
        %v413 = vshrl.u32 %v412, 7
        %v414 = vsub.s32 0, %v413
        %v415 = vrot.slane %v249, %v414
        %v416 = vlaneseq
        %v417 = vshrl.u32 %v416, 7
        %v418 = vsub.s32 0, %v417
        %v419 = vrot.slane %v253, %v418
        %v420 = vlaneseq
        %v421 = vshrl.u32 %v420, 7
        %v422 = vsub.s32 0, %v421
        %v423 = vrot.slane %v257, %v422
        %v424 = vmul.f32 %v402, %v411
        %v425 = vmul.f32 %v402, %v415
        %v426 = vmul.f32 %v402, %v419
        %v427 = vmul.f32 %v402, %v423
        %v428 = vmul.f32 %v402, %v296
        %v429 = vmul.f32 %v406, %v411
        %v430 = vmul.f32 %v406, %v415
        %v431 = vmul.f32 %v406, %v419
        %v432 = vmul.f32 %v406, %v423
        %v433 = vmul.f32 %v406, %v296
        %444 = vrot.lane.b32.xlu0 %v424, 6
        %v445 = vpop.permute.xlu0 %444
        %446 = vrot.lane.b32.xlu0 %v425, 6
        %v447 = vpop.permute.xlu0 %446
        %448 = vrot.lane.b32.xlu0 %v426, 6
        %v449 = vpop.permute.xlu0 %448
        %450 = vrot.lane.b32.xlu0 %v427, 6
        %v451 = vpop.permute.xlu0 %450
        %452 = vrot.lane.b32.xlu0 %v428, 6
        %v453 = vpop.permute.xlu0 %452
        %454 = vrot.lane.b32.xlu0 %v429, 6
        %v455 = vpop.permute.xlu0 %454
        %456 = vrot.lane.b32.xlu0 %v430, 6
        %v457 = vpop.permute.xlu0 %456
        %458 = vrot.lane.b32.xlu0 %v431, 6
        %v459 = vpop.permute.xlu0 %458
        %460 = vrot.lane.b32.xlu0 %v432, 6
        %v461 = vpop.permute.xlu0 %460
        %462 = vrot.lane.b32.xlu0 %v433, 6
        %v463 = vpop.permute.xlu0 %462
        %vm464 = vcmask 48128
        %v465 = vsel %vm464, %v445, %v447
        %v466 = vsel %vm464, %v447, %v449
        %v467 = vsel %vm464, %v449, %v451
        %v468 = vsel %vm464, %v451, %v453
        %v469 = vsel %vm464, %v455, %v457
        %v470 = vsel %vm464, %v457, %v459
        %v471 = vsel %vm464, %v459, %v461
        %v472 = vsel %vm464, %v461, %v463
        %v483 = vadd.f32 %v390, %v445
        %v484 = vadd.f32 %v391, %v465
        %v485 = vadd.f32 %v392, %v466
        %v486 = vadd.f32 %v393, %v467
        %v487 = vadd.f32 %v394, %v468
        %v488 = vadd.f32 %v395, %v455
        %v489 = vadd.f32 %v396, %v469
        %v490 = vadd.f32 %v397, %v470
        %v491 = vadd.f32 %v398, %v471
        %v492 = vadd.f32 %v399, %v472
        %493 = vset.pattern.permute.xlu0 3
        %494 = vperm.xlu0 %493, %v239
        %v495 = vpop.permute.xlu0 %494
        %497 = vset.pattern.permute.xlu0 3
        %498 = vperm.xlu0 %497, %v240
        %v499 = vpop.permute.xlu0 %498
        %v501 = vadd.f32 %v483, %v495
        %v502 = vadd.f32 %v484, %v495
        %v503 = vadd.f32 %v485, %v495
        %v504 = vadd.f32 %v486, %v495
        %v505 = vadd.f32 %v487, %v495
        %v506 = vadd.f32 %v488, %v499
        %v507 = vadd.f32 %v489, %v499
        %v508 = vadd.f32 %v490, %v499
        %v509 = vadd.f32 %v491, %v499
        %v510 = vadd.f32 %v492, %v499
        %v511 = vmax.f32 %v501, 0.0
        %v512 = vmax.f32 %v502, 0.0
        %v513 = vmax.f32 %v503, 0.0
        %v514 = vmax.f32 %v504, 0.0
        %v515 = vmax.f32 %v505, 0.0
        %v516 = vmax.f32 %v506, 0.0
        %v517 = vmax.f32 %v507, 0.0
        %v518 = vmax.f32 %v508, 0.0
        %v519 = vmax.f32 %v509, 0.0
        %v520 = vmax.f32 %v510, 0.0
        %531 = vrot.lane.b32.xlu0 %v511, 121
        %v532 = vpop.permute.xlu0 %531
        %533 = vrot.lane.b32.xlu0 %v512, 121
        %v534 = vpop.permute.xlu0 %533
        %535 = vrot.lane.b32.xlu0 %v513, 121
        %v536 = vpop.permute.xlu0 %535
        %537 = vrot.lane.b32.xlu0 %v514, 121
        %v538 = vpop.permute.xlu0 %537
        %539 = vrot.lane.b32.xlu0 %v515, 121
        %v540 = vpop.permute.xlu0 %539
        %541 = vrot.lane.b32.xlu0 %v516, 121
        %v542 = vpop.permute.xlu0 %541
        %543 = vrot.lane.b32.xlu0 %v517, 121
        %v544 = vpop.permute.xlu0 %543
        %545 = vrot.lane.b32.xlu0 %v518, 121
        %v546 = vpop.permute.xlu0 %545
        %547 = vrot.lane.b32.xlu0 %v519, 121
        %v548 = vpop.permute.xlu0 %547
        %549 = vrot.lane.b32.xlu0 %v520, 121
        %v550 = vpop.permute.xlu0 %549
        %vm551 = vcmask 990208
        %v552 = vsel %vm551, %v532, %v534
        %v553 = vsel %vm551, %v534, %v536
        %v554 = vsel %vm551, %v536, %v538
        %v555 = vsel %vm551, %v538, %v540
        %v556 = vsel %vm551, %v542, %v544
        %v557 = vsel %vm551, %v544, %v546
        %v558 = vsel %vm551, %v546, %v548
        %v559 = vsel %vm551, %v548, %v550
        %564 = vrot.lane.b32.xlu0 %v552, 8
        %v565 = vpop.permute.xlu0 %564
        %566 = vrot.lane.b32.xlu0 %v556, 8
        %v567 = vpop.permute.xlu0 %566
        %v568 = vsel %vm267, %v565, %v540
        %v569 = vsel %vm267, %v567, %v550
        %572 = vrot.lane.b32.xlu0 %v552, 6
        %v573 = vpop.permute.xlu0 %572
        %574 = vrot.lane.b32.xlu0 %v553, 6
        %v575 = vpop.permute.xlu0 %574
        %576 = vrot.lane.b32.xlu0 %v554, 6
        %v577 = vpop.permute.xlu0 %576
        %578 = vrot.lane.b32.xlu0 %v555, 6
        %v579 = vpop.permute.xlu0 %578
        %580 = vrot.lane.b32.xlu0 %v568, 6
        %v581 = vpop.permute.xlu0 %580
        %582 = vrot.lane.b32.xlu0 %v556, 6
        %v583 = vpop.permute.xlu0 %582
        %584 = vrot.lane.b32.xlu0 %v557, 6
        %v585 = vpop.permute.xlu0 %584
        %586 = vrot.lane.b32.xlu0 %v558, 6
        %v587 = vpop.permute.xlu0 %586
        %588 = vrot.lane.b32.xlu0 %v559, 6
        %v589 = vpop.permute.xlu0 %588
        %590 = vrot.lane.b32.xlu0 %v569, 6
        %v591 = vpop.permute.xlu0 %590
        %v592 = vsel %vm464, %v573, %v575
        %v593 = vsel %vm464, %v575, %v577
        %v594 = vsel %vm464, %v577, %v579
        %v595 = vsel %vm464, %v579, %v581
        %v596 = vsel %vm464, %v583, %v585
        %v597 = vsel %vm464, %v585, %v587
        %v598 = vsel %vm464, %v587, %v589
        %v599 = vsel %vm464, %v589, %v591
        %v610 = vmax.f32 %v511, %v573
        %v611 = vmax.f32 %v512, %v592
        %v612 = vmax.f32 %v513, %v593
        %v613 = vmax.f32 %v514, %v594
        %v614 = vmax.f32 %v515, %v595
        %v615 = vmax.f32 %v516, %v583
        %v616 = vmax.f32 %v517, %v596
        %v617 = vmax.f32 %v518, %v597
        %v618 = vmax.f32 %v519, %v598
        %v619 = vmax.f32 %v520, %v599
        %v620 = vld [vmem:[%s3] sm:$0xff]
        %v621 = vld [vmem:[%s3 + $0x8] sm:$0xff]
        %v622 = vld [vmem:[%s3 + $0x10] sm:$0xff]
        %v623 = vld [vmem:[%s3 + $0x18] sm:$0xff]
        %v624 = vld [vmem:[%s3 + $0x20] sm:$0xff]
        %v625 = vld [vmem:[%s3 + $0x28] sm:$0xff]
        %v626 = vld [vmem:[%s3 + $0x30] sm:$0xff]
        %v627 = vld [vmem:[%s3 + $0x38] sm:$0xff]
        %v628 = vld [vmem:[%s3 + $0x40] sm:$0xff]
        %v629 = vld [vmem:[%s3 + $0x48] sm:$0xff]
        %v630 = vld [vmem:[%s3 + $0x50] sm:$0xff]
        %v631 = vld [vmem:[%s3 + $0x58] sm:$0xff]
        %v632 = vld [vmem:[%s3 + $0x60] sm:$0xff]
        %v633 = vld [vmem:[%s3 + $0x68] sm:$0xff]
        %v634 = vld [vmem:[%s3 + $0x70] sm:$0xff]
        %v635 = vld [vmem:[%s3 + $0x78] sm:$0xff]
        %v636 = vld [vmem:[%s3 + $0x80] sm:$0xff]
        %v637 = vld [vmem:[%s3 + $0x88] sm:$0xff]
        %v638 = vld [vmem:[%s3 + $0x90] sm:$0xff]
        %v639 = vld [vmem:[%s3 + $0x98] sm:$0xff]
        %v640 = vld [vmem:[%s3 + $0xa0] sm:$0xff]
        %v641 = vld [vmem:[%s3 + $0xa8] sm:$0xff]
        %v642 = vld [vmem:[%s3 + $0xb0] sm:$0xff]
        %v643 = vld [vmem:[%s3 + $0xb8] sm:$0xff]
        %v644 = vld [vmem:[%s3 + $0xc0] sm:$0xff]
        %v645 = vld [vmem:[%s3 + $0xc8] sm:$0xff]
        %v646 = vld [vmem:[%s3 + $0xd0] sm:$0xff]
        %v647 = vld [vmem:[%s3 + $0xd8] sm:$0xff]
        %v648 = vld [vmem:[%s3 + $0xe0] sm:$0xff]
        %v649 = vld [vmem:[%s3 + $0xe8] sm:$0xff]
        %v650 = vld [vmem:[%s3 + $0xf0] sm:$0xff]
        %v651 = vld [vmem:[%s3 + $0xf8] sm:$0xff]
        %v652 = vld [vmem:[%s3 + $0x100] sm:$0xff]
        %v653 = vld [vmem:[%s3 + $0x108] sm:$0xff]
        %v654 = vld [vmem:[%s3 + $0x110] sm:$0xff]
        %v655 = vld [vmem:[%s3 + $0x118] sm:$0xff]
        %v656 = vld [vmem:[%s3 + $0x120] sm:$0xff]
        %v657 = vld [vmem:[%s3 + $0x128] sm:$0xff]
        %v658 = vld [vmem:[%s3 + $0x130] sm:$0xff]
        %v659 = vld [vmem:[%s3 + $0x138] sm:$0xff]
        %v660 = vld [vmem:[%s3 + $0x140] sm:$0xff]
        %v661 = vld [vmem:[%s3 + $0x148] sm:$0xff]
        %v662 = vld [vmem:[%s3 + $0x150] sm:$0xff]
        %v663 = vld [vmem:[%s3 + $0x158] sm:$0xff]
        %v664 = vld [vmem:[%s3 + $0x160] sm:$0xff]
        %v665 = vld [vmem:[%s3 + $0x168] sm:$0xff]
        %v666 = vld [vmem:[%s3 + $0x170] sm:$0xff]
        %v667 = vld [vmem:[%s3 + $0x178] sm:$0xff]
        %v668 = vld [vmem:[%s3 + $0x180] sm:$0xff]
        %v669 = vld [vmem:[%s3 + $0x188] sm:$0xff]
        %v670 = vld [vmem:[%s3 + $0x190] sm:$0xff]
        %v671 = vld [vmem:[%s3 + $0x198] sm:$0xff]
        %v672 = vld [vmem:[%s3 + $0x1a0] sm:$0xff]
        %v673 = vld [vmem:[%s3 + $0x1a8] sm:$0xff]
        %v674 = vld [vmem:[%s3 + $0x1b0] sm:$0xff]
        %v675 = vld [vmem:[%s3 + $0x1b8] sm:$0xff]
        %v676 = vld [vmem:[%s3 + $0x1c0] sm:$0xff]
        %v677 = vld [vmem:[%s3 + $0x1c8] sm:$0xff]
        %v678 = vld [vmem:[%s3 + $0x1d0] sm:$0xff]
        %v679 = vld [vmem:[%s3 + $0x1d8] sm:$0xff]
        %v680 = vld [vmem:[%s3 + $0x1e0] sm:$0xff]
        %v681 = vld [vmem:[%s3 + $0x1e8] sm:$0xff]
        %v682 = vld [vmem:[%s3 + $0x1f0] sm:$0xff]
        %v683 = vld [vmem:[%s3 + $0x1f8] sm:$0xff]
        %v684 = vld [vmem:[%s3 + $0x200] sm:$0xff]
        %v685 = vld [vmem:[%s3 + $0x208] sm:$0xff]
        %v686 = vld [vmem:[%s3 + $0x210] sm:$0xff]
        %v687 = vld [vmem:[%s3 + $0x218] sm:$0xff]
        %v688 = vld [vmem:[%s3 + $0x220] sm:$0xff]
        %v689 = vld [vmem:[%s3 + $0x228] sm:$0xff]
        %v690 = vld [vmem:[%s3 + $0x230] sm:$0xff]
        %v691 = vld [vmem:[%s3 + $0x238] sm:$0xff]
        %v692 = vld [vmem:[%s3 + $0x240] sm:$0xff]
        %v693 = vld [vmem:[%s3 + $0x248] sm:$0xff]
        %v694 = vld [vmem:[%s3 + $0x250] sm:$0xff]
        %v695 = vld [vmem:[%s3 + $0x258] sm:$0xff]
        %v696 = vld [vmem:[%s3 + $0x260] sm:$0xff]
        %v697 = vld [vmem:[%s3 + $0x268] sm:$0xff]
        %v698 = vld [vmem:[%s3 + $0x270] sm:$0xff]
        %v699 = vld [vmem:[%s3 + $0x278] sm:$0xff]
        %v700 = vld [vmem:[%s3 + $0x280] sm:$0xff]
        %v701 = vld [vmem:[%s3 + $0x288] sm:$0xff]
        %v702 = vld [vmem:[%s3 + $0x290] sm:$0xff]
        %v703 = vld [vmem:[%s3 + $0x298] sm:$0xff]
        %v704 = vld [vmem:[%s3 + $0x2a0] sm:$0xff]
        %v705 = vld [vmem:[%s3 + $0x2a8] sm:$0xff]
        %v706 = vld [vmem:[%s3 + $0x2b0] sm:$0xff]
        %v707 = vld [vmem:[%s3 + $0x2b8] sm:$0xff]
        %v708 = vld [vmem:[%s3 + $0x2c0] sm:$0xff]
        %v709 = vld [vmem:[%s3 + $0x2c8] sm:$0xff]
        %v710 = vld [vmem:[%s3 + $0x2d0] sm:$0xff]
        %v711 = vld [vmem:[%s3 + $0x2d8] sm:$0xff]
        %v712 = vld [vmem:[%s3 + $0x2e0] sm:$0xff]
        %v713 = vld [vmem:[%s3 + $0x2e8] sm:$0xff]
        %v714 = vld [vmem:[%s3 + $0x2f0] sm:$0xff]
        %v715 = vld [vmem:[%s3 + $0x2f8] sm:$0xff]
        %v716 = vld [vmem:[%s3 + $0x300] sm:$0xff]
        %v717 = vld [vmem:[%s3 + $0x308] sm:$0xff]
        %v718 = vld [vmem:[%s3 + $0x310] sm:$0xff]
        %v719 = vld [vmem:[%s3 + $0x318] sm:$0xff]
        %v720 = vld [vmem:[%s3 + $0x320] sm:$0xff]
        %v721 = vld [vmem:[%s3 + $0x328] sm:$0xff]
        %v722 = vld [vmem:[%s3 + $0x330] sm:$0xff]
        %v723 = vld [vmem:[%s3 + $0x338] sm:$0xff]
        %v724 = vld [vmem:[%s3 + $0x340] sm:$0xff]
        %v725 = vld [vmem:[%s3 + $0x348] sm:$0xff]
        %v726 = vld [vmem:[%s3 + $0x350] sm:$0xff]
        %v727 = vld [vmem:[%s3 + $0x358] sm:$0xff]
        %v728 = vld [vmem:[%s3 + $0x360] sm:$0xff]
        %v729 = vld [vmem:[%s3 + $0x368] sm:$0xff]
        %v730 = vld [vmem:[%s3 + $0x370] sm:$0xff]
        %v731 = vld [vmem:[%s3 + $0x378] sm:$0xff]
        %v732 = vld [vmem:[%s3 + $0x380] sm:$0xff]
        %v733 = vld [vmem:[%s3 + $0x388] sm:$0xff]
        %v734 = vld [vmem:[%s3 + $0x390] sm:$0xff]
        %v735 = vld [vmem:[%s3 + $0x398] sm:$0xff]
        %v736 = vld [vmem:[%s3 + $0x3a0] sm:$0xff]
        %v737 = vld [vmem:[%s3 + $0x3a8] sm:$0xff]
        %v738 = vld [vmem:[%s3 + $0x3b0] sm:$0xff]
        %v739 = vld [vmem:[%s3 + $0x3b8] sm:$0xff]
        %v740 = vld [vmem:[%s3 + $0x3c0] sm:$0xff]
        %v741 = vld [vmem:[%s3 + $0x3c8] sm:$0xff]
        %v742 = vld [vmem:[%s3 + $0x3d0] sm:$0xff]
        %v743 = vld [vmem:[%s3 + $0x3d8] sm:$0xff]
        %v744 = vld [vmem:[%s3 + $0x3e0] sm:$0xff]
        %v745 = vld [vmem:[%s3 + $0x3e8] sm:$0xff]
        %v746 = vld [vmem:[%s3 + $0x3f0] sm:$0xff]
        %v747 = vld [vmem:[%s3 + $0x3f8] sm:$0xff]
        %v748 = vld [vmem:[%s3 + $0x400] sm:$0xff]
        %v749 = vld [vmem:[%s3 + $0x408] sm:$0xff]
        %v750 = vld [vmem:[%s3 + $0x410] sm:$0xff]
        %v751 = vld [vmem:[%s3 + $0x418] sm:$0xff]
        %v752 = vld [vmem:[%s3 + $0x420] sm:$0xff]
        %v753 = vld [vmem:[%s3 + $0x428] sm:$0xff]
        %v754 = vld [vmem:[%s3 + $0x430] sm:$0xff]
        %v755 = vld [vmem:[%s3 + $0x438] sm:$0xff]
        %v756 = vld [vmem:[%s3 + $0x440] sm:$0xff]
        %v757 = vld [vmem:[%s3 + $0x448] sm:$0xff]
        %v758 = vld [vmem:[%s3 + $0x450] sm:$0xff]
        %v759 = vld [vmem:[%s3 + $0x458] sm:$0xff]
        %v760 = vld [vmem:[%s3 + $0x460] sm:$0xff]
        %v761 = vld [vmem:[%s3 + $0x468] sm:$0xff]
        %v762 = vld [vmem:[%s3 + $0x470] sm:$0xff]
        %v763 = vld [vmem:[%s3 + $0x478] sm:$0xff]
        %v764 = vld [vmem:[%s3 + $0x480] sm:$0xff]
        %v765 = vld [vmem:[%s3 + $0x488] sm:$0xff]
        %v766 = vld [vmem:[%s3 + $0x490] sm:$0xff]
        %v767 = vld [vmem:[%s3 + $0x498] sm:$0xff]
        %v768 = vld [vmem:[%s3 + $0x4a0] sm:$0xff]
        %v769 = vld [vmem:[%s3 + $0x4a8] sm:$0xff]
        %v770 = vld [vmem:[%s3 + $0x4b0] sm:$0xff]
        %v771 = vld [vmem:[%s3 + $0x4b8] sm:$0xff]
        %v772 = vld [vmem:[%s3 + $0x4c0] sm:$0xff]
        %v773 = vld [vmem:[%s3 + $0x4c8] sm:$0xff]
        %v774 = vld [vmem:[%s3 + $0x4d0] sm:$0xff]
        %v775 = vld [vmem:[%s3 + $0x4d8] sm:$0xff]
        %v776 = vld [vmem:[%s3 + $0x4e0] sm:$0xff]
        %v777 = vld [vmem:[%s3 + $0x4e8] sm:$0xff]
        %v778 = vld [vmem:[%s3 + $0x4f0] sm:$0xff]
        %v779 = vld [vmem:[%s3 + $0x4f8] sm:$0xff]
        %v780 = vld [vmem:[%s3 + $0x500] sm:$0xff]
        %v781 = vld [vmem:[%s3 + $0x508] sm:$0xff]
        %v782 = vld [vmem:[%s3 + $0x510] sm:$0xff]
        %v783 = vld [vmem:[%s3 + $0x518] sm:$0xff]
        %v784 = vld [vmem:[%s3 + $0x520] sm:$0xff]
        %v785 = vld [vmem:[%s3 + $0x528] sm:$0xff]
        %v786 = vld [vmem:[%s3 + $0x530] sm:$0xff]
        %v787 = vld [vmem:[%s3 + $0x538] sm:$0xff]
        %v788 = vld [vmem:[%s3 + $0x540] sm:$0xff]
        %v789 = vld [vmem:[%s3 + $0x548] sm:$0xff]
        %v790 = vld [vmem:[%s3 + $0x550] sm:$0xff]
        %v791 = vld [vmem:[%s3 + $0x558] sm:$0xff]
        %v792 = vld [vmem:[%s3 + $0x560] sm:$0xff]
        %v793 = vld [vmem:[%s3 + $0x568] sm:$0xff]
        %v794 = vld [vmem:[%s3 + $0x570] sm:$0xff]
        %v795 = vld [vmem:[%s3 + $0x578] sm:$0xff]
        %v796 = vld [vmem:[%s3 + $0x580] sm:$0xff]
        %v797 = vld [vmem:[%s3 + $0x588] sm:$0xff]
        %v798 = vld [vmem:[%s3 + $0x590] sm:$0xff]
        %v799 = vld [vmem:[%s3 + $0x598] sm:$0xff]
        %v800 = vld [vmem:[%s3 + $0x5a0] sm:$0xff]
        %v801 = vld [vmem:[%s3 + $0x5a8] sm:$0xff]
        %v802 = vld [vmem:[%s3 + $0x5b0] sm:$0xff]
        %v803 = vld [vmem:[%s3 + $0x5b8] sm:$0xff]
        %v804 = vld [vmem:[%s3 + $0x5c0] sm:$0xff]
        %v805 = vld [vmem:[%s3 + $0x5c8] sm:$0xff]
        %v806 = vld [vmem:[%s3 + $0x5d0] sm:$0xff]
        %v807 = vld [vmem:[%s3 + $0x5d8] sm:$0xff]
        %v808 = vld [vmem:[%s3 + $0x5e0] sm:$0xff]
        %v809 = vld [vmem:[%s3 + $0x5e8] sm:$0xff]
        %v810 = vld [vmem:[%s3 + $0x5f0] sm:$0xff]
        %v811 = vld [vmem:[%s3 + $0x5f8] sm:$0xff]
        %v812 = vld [vmem:[%s3 + $0x600] sm:$0xff]
        %v813 = vld [vmem:[%s3 + $0x608] sm:$0xff]
        %v814 = vld [vmem:[%s3 + $0x610] sm:$0xff]
        %825 = vrot.lane.b32.xlu0 %v610, 121
        %v826 = vpop.permute.xlu0 %825
        %827 = vrot.lane.b32.xlu0 %v611, 121
        %v828 = vpop.permute.xlu0 %827
        %829 = vrot.lane.b32.xlu0 %v612, 121
        %v830 = vpop.permute.xlu0 %829
        %831 = vrot.lane.b32.xlu0 %v613, 121
        %v832 = vpop.permute.xlu0 %831
        %833 = vrot.lane.b32.xlu0 %v614, 121
        %v834 = vpop.permute.xlu0 %833
        %835 = vrot.lane.b32.xlu0 %v615, 121
        %v836 = vpop.permute.xlu0 %835
        %837 = vrot.lane.b32.xlu0 %v616, 121
        %v838 = vpop.permute.xlu0 %837
        %839 = vrot.lane.b32.xlu0 %v617, 121
        %v840 = vpop.permute.xlu0 %839
        %841 = vrot.lane.b32.xlu0 %v618, 121
        %v842 = vpop.permute.xlu0 %841
        %843 = vrot.lane.b32.xlu0 %v619, 121
        %v844 = vpop.permute.xlu0 %843
        %v845 = vsel %vm551, %v826, %v828
        %v846 = vsel %vm551, %v828, %v830
        %v847 = vsel %vm551, %v830, %v832
        %v848 = vsel %vm551, %v832, %v834
        %v849 = vsel %vm551, %v836, %v838
        %v850 = vsel %vm551, %v838, %v840
        %v851 = vsel %vm551, %v840, %v842
        %v852 = vsel %vm551, %v842, %v844
        %vm861 = vcmask 64512
        %v862 = vsel %vm861, %v834, 0
        %v864 = vsel %vm861, %v844, 0
        %866 = vmatprep.subr.mxu0 %v621
        %867 = vmatpush1.msra.mxu0 %v620
        %868 = vmatprep.subr.mxu0 %v624
        %869 = vmatpush1.msra.mxu0 %v623
        %870 = vmatprep.subr.mxu0 %v627
        %871 = vmatpush1.msra.mxu0 %v626
        %872 = vmatprep.subr.mxu0 %v630
        %873 = vmatpush1.msra.mxu0 %v629
        %874 = vmatprep.subr.mxu0 %v633
        %875 = vmatpush1.msra.mxu0 %v632
        %876 = vmatprep.subr.mxu0 %v636
        %877 = vmatpush1.msra.mxu0 %v635
        %878 = vmatprep.subr.mxu0 %v639
        %879 = vmatpush1.msra.mxu0 %v638
        %880 = vmatprep.subr.mxu0 %v642
        %881 = vmatpush1.msra.mxu0 %v641
        %882 = vmatprep.subr.mxu0 %v645
        %883 = vmatpush1.msra.mxu0 %v644
        %884 = vmatprep.subr.mxu0 %v648
        %885 = vmatpush1.msra.mxu0 %v647
        %886 = vmatprep.subr.mxu0 %v651
        %887 = vmatpush1.msra.mxu0 %v650
        %888 = vmatprep.subr.mxu0 %v654
        %889 = vmatpush1.msra.mxu0 %v653
        %890 = vmatprep.subr.mxu0 %v657
        %891 = vmatpush1.msra.mxu0 %v656
        %892 = vmatprep.subr.mxu0 %v660
        %893 = vmatpush1.msra.mxu0 %v659
        %894 = vmatprep.subr.mxu0 %v663
        %895 = vmatpush1.msra.mxu0 %v662
        %896 = vmatprep.subr.mxu0 %v666
        %897 = vmatpush1.msra.mxu0 %v665
        %898 = vmatprep.subr.mxu0 %v669
        %899 = vmatpush1.msra.mxu0 %v668
        %900 = vmatprep.subr.mxu0 %v672
        %901 = vmatpush1.msra.mxu0 %v671
        %902 = vmatprep.subr.mxu0 %v675
        %903 = vmatpush1.msra.mxu0 %v674
        %904 = vmatprep.subr.mxu0 %v678
        %905 = vmatpush1.msra.mxu0 %v677
        %906 = vmatprep.subr.mxu0 %v681
        %907 = vmatpush1.msra.mxu0 %v680
        %908 = vmatprep.subr.mxu0 %v684
        %909 = vmatpush1.msra.mxu0 %v683
        %910 = vmatprep.subr.mxu0 %v687
        %911 = vmatpush1.msra.mxu0 %v686
        %912 = vmatprep.subr.mxu0 %v690
        %913 = vmatpush1.msra.mxu0 %v689
        %914 = vmatprep.subr.mxu0 %v693
        %915 = vmatpush1.msra.mxu0 %v692
        %916 = vmatprep.subr.mxu0 %v696
        %917 = vmatpush1.msra.mxu0 %v695
        %918 = vmatprep.subr.mxu0 %v699
        %919 = vmatpush1.msra.mxu0 %v698
        %920 = vmatprep.subr.mxu0 %v702
        %921 = vmatpush1.msra.mxu0 %v701
        %922 = vmatprep.subr.mxu0 %v705
        %923 = vmatpush1.msra.mxu0 %v704
        %924 = vmatprep.subr.mxu0 %v708
        %925 = vmatpush1.msra.mxu0 %v707
        %926 = vmatprep.subr.mxu0 %v711
        %927 = vmatpush1.msra.mxu0 %v710
        %928 = vmatprep.subr.mxu0 %v714
        %929 = vmatpush1.msra.mxu0 %v713
        %930 = vmatprep.mubr.f32.mxu0 %v846
        %931 = vmatmul.mubr.f32.gmra.mrb[0].mxu0 %v845
        %v932 = vpop.f32.mrb[0].mxu0
        %v933 = vadd.f32 0.0, %v932
        %v934 = vpop.f32.mrb[0].mxu0
        %v935 = vadd.f32 0.0, %v934
        %936 = vmatprep.mubr.f32.mxu0 %v850
        %937 = vmatmul.mubr.f32.gmra.mrb[0].mxu0 %v849
        %v938 = vpop.f32.mrb[0].mxu0
        %v939 = vadd.f32 0.0, %v938
        %v940 = vpop.f32.mrb[0].mxu0
        %v941 = vadd.f32 0.0, %v940
        %942 = vdwg.mxu0
        %943 = vmatprep.subr.mxu0 %v717
        %944 = vmatpush1.msra.mxu0 %v716
        %945 = vmatprep.subr.mxu0 %v720
        %946 = vmatpush1.msra.mxu0 %v719
        %947 = vmatprep.subr.mxu0 %v723
        %948 = vmatpush1.msra.mxu0 %v722
        %949 = vmatprep.subr.mxu0 %v726
        %950 = vmatpush1.msra.mxu0 %v725
        %951 = vmatprep.subr.mxu0 %v729
        %952 = vmatpush1.msra.mxu0 %v728
        %953 = vmatprep.subr.mxu0 %v732
        %954 = vmatpush1.msra.mxu0 %v731
        %955 = vmatprep.subr.mxu0 %v735
        %956 = vmatpush1.msra.mxu0 %v734
        %957 = vmatprep.subr.mxu0 %v738
        %958 = vmatpush1.msra.mxu0 %v737
        %959 = vmatprep.subr.mxu0 %v741
        %960 = vmatpush1.msra.mxu0 %v740
        %961 = vmatprep.subr.mxu0 %v744
        %962 = vmatpush1.msra.mxu0 %v743
        %963 = vmatprep.subr.mxu0 %v747
        %964 = vmatpush1.msra.mxu0 %v746
        %965 = vmatprep.subr.mxu0 %v750
        %966 = vmatpush1.msra.mxu0 %v749
        %967 = vmatprep.subr.mxu0 %v753
        %968 = vmatpush1.msra.mxu0 %v752
        %969 = vmatprep.subr.mxu0 %v756
        %970 = vmatpush1.msra.mxu0 %v755
        %971 = vmatprep.subr.mxu0 %v759
        %972 = vmatpush1.msra.mxu0 %v758
        %973 = vmatprep.subr.mxu0 %v762
        %974 = vmatpush1.msra.mxu0 %v761
        %975 = vmatprep.subr.mxu0 %v765
        %976 = vmatpush1.msra.mxu0 %v764
        %977 = vmatprep.subr.mxu0 %v768
        %978 = vmatpush1.msra.mxu0 %v767
        %979 = vmatprep.subr.mxu0 %v771
        %980 = vmatpush1.msra.mxu0 %v770
        %981 = vmatprep.subr.mxu0 %v774
        %982 = vmatpush1.msra.mxu0 %v773
        %983 = vmatprep.subr.mxu0 %v777
        %984 = vmatpush1.msra.mxu0 %v776
        %985 = vmatprep.subr.mxu0 %v780
        %986 = vmatpush1.msra.mxu0 %v779
        %987 = vmatprep.subr.mxu0 %v783
        %988 = vmatpush1.msra.mxu0 %v782
        %989 = vmatprep.subr.mxu0 %v786
        %990 = vmatpush1.msra.mxu0 %v785
        %991 = vmatprep.subr.mxu0 %v789
        %992 = vmatpush1.msra.mxu0 %v788
        %993 = vmatprep.subr.mxu0 %v792
        %994 = vmatpush1.msra.mxu0 %v791
        %995 = vmatprep.subr.mxu0 %v795
        %996 = vmatpush1.msra.mxu0 %v794
        %997 = vmatprep.subr.mxu0 %v798
        %998 = vmatpush1.msra.mxu0 %v797
        %999 = vmatprep.subr.mxu0 %v801
        %1000 = vmatpush1.msra.mxu0 %v800
        %1001 = vmatprep.subr.mxu0 %v804
        %1002 = vmatpush1.msra.mxu0 %v803
        %1003 = vmatprep.subr.mxu0 %v807
        %1004 = vmatpush1.msra.mxu0 %v806
        %1005 = vmatprep.subr.mxu0 %v810
        %1006 = vmatpush1.msra.mxu0 %v809
        %1007 = vmatprep.mubr.f32.mxu0 %v848
        %1008 = vmatmul.mubr.f32.gmra.mrb[0].mxu0 %v847
        %v1009 = vpop.f32.mrb[0].mxu0
        %v1010 = vadd.f32 %v933, %v1009
        %v1011 = vpop.f32.mrb[0].mxu0
        %v1012 = vadd.f32 %v935, %v1011
        %1013 = vmatprep.mubr.f32.mxu0 %v852
        %1014 = vmatmul.mubr.f32.gmra.mrb[0].mxu0 %v851
        %v1015 = vpop.f32.mrb[0].mxu0
        %v1016 = vadd.f32 %v939, %v1015
        %v1017 = vpop.f32.mrb[0].mxu0
        %v1018 = vadd.f32 %v941, %v1017
        %1019 = vdwg.mxu0
        %1020 = vmatprep.subr.mxu0 %v813
        %1021 = vmatpush1.msra.mxu0 %v812
        %1022 = vmatprep.subr.mxu0 0.0
        %1023 = vmatpush1.msra.mxu0 0.0
        %1024 = vmatprep.subr.mxu0 0.0
        %1025 = vmatpush1.msra.mxu0 0.0
        %1026 = vmatprep.subr.mxu0 0.0
        %1027 = vmatpush1.msra.mxu0 0.0
        %1028 = vmatprep.subr.mxu0 0.0
        %1029 = vmatpush1.msra.mxu0 0.0
        %1030 = vmatprep.subr.mxu0 0.0
        %1031 = vmatpush1.msra.mxu0 0.0
        %1032 = vmatprep.subr.mxu0 0.0
        %1033 = vmatpush1.msra.mxu0 0.0
        %1034 = vmatprep.subr.mxu0 0.0
        %1035 = vmatpush1.msra.mxu0 0.0
        %1036 = vmatprep.subr.mxu0 0.0
        %1037 = vmatpush1.msra.mxu0 0.0
        %1038 = vmatprep.subr.mxu0 0.0
        %1039 = vmatpush1.msra.mxu0 0.0
        %1040 = vmatprep.subr.mxu0 0.0
        %1041 = vmatpush1.msra.mxu0 0.0
        %1042 = vmatprep.subr.mxu0 0.0
        %1043 = vmatpush1.msra.mxu0 0.0
        %1044 = vmatprep.subr.mxu0 0.0
        %1045 = vmatpush1.msra.mxu0 0.0
        %1046 = vmatprep.subr.mxu0 0.0
        %1047 = vmatpush1.msra.mxu0 0.0
        %1048 = vmatprep.subr.mxu0 0.0
        %1049 = vmatpush1.msra.mxu0 0.0
        %1050 = vmatprep.subr.mxu0 0.0
        %1051 = vmatpush1.msra.mxu0 0.0
        %1052 = vmatprep.subr.mxu0 0.0
        %1053 = vmatpush1.msra.mxu0 0.0
        %1054 = vmatprep.subr.mxu0 0.0
        %1055 = vmatpush1.msra.mxu0 0.0
        %1056 = vmatprep.subr.mxu0 0.0
        %1057 = vmatpush1.msra.mxu0 0.0
        %1058 = vmatprep.subr.mxu0 0.0
        %1059 = vmatpush1.msra.mxu0 0.0
        %1060 = vmatprep.subr.mxu0 0.0
        %1061 = vmatpush1.msra.mxu0 0.0
        %1062 = vmatprep.subr.mxu0 0.0
        %1063 = vmatpush1.msra.mxu0 0.0
        %1064 = vmatprep.subr.mxu0 0.0
        %1065 = vmatpush1.msra.mxu0 0.0
        %1066 = vmatprep.subr.mxu0 0.0
        %1067 = vmatpush1.msra.mxu0 0.0
        %1068 = vmatprep.subr.mxu0 0.0
        %1069 = vmatpush1.msra.mxu0 0.0
        %1070 = vmatprep.subr.mxu0 0.0
        %1071 = vmatpush1.msra.mxu0 0.0
        %1072 = vmatprep.subr.mxu0 0.0
        %1073 = vmatpush1.msra.mxu0 0.0
        %1074 = vmatprep.subr.mxu0 0.0
        %1075 = vmatpush1.msra.mxu0 0.0
        %1076 = vmatprep.subr.mxu0 0.0
        %1077 = vmatpush1.msra.mxu0 0.0
        %1078 = vmatprep.subr.mxu0 0.0
        %1079 = vmatpush1.msra.mxu0 0.0
        %1080 = vmatprep.subr.mxu0 0.0
        %1081 = vmatpush1.msra.mxu0 0.0
        %1082 = vmatprep.subr.mxu0 0.0
        %1083 = vmatpush1.msra.mxu0 0.0
        %1084 = vmatprep.mubr.f32.mxu0 0.0
        %1085 = vmatmul.mubr.f32.gmra.mrb[0].mxu0 %v862
        %v1086 = vpop.f32.mrb[0].mxu0
        %v1087 = vadd.f32 %v1010, %v1086
        %v1088 = vpop.f32.mrb[0].mxu0
        %v1089 = vadd.f32 %v1012, %v1088
        %1090 = vmatprep.mubr.f32.mxu0 0.0
        %1091 = vmatmul.mubr.f32.gmra.mrb[0].mxu0 %v864
        %v1092 = vpop.f32.mrb[0].mxu0
        %v1093 = vadd.f32 %v1016, %v1092
        %v1094 = vpop.f32.mrb[0].mxu0
        %v1095 = vadd.f32 %v1018, %v1094
        %1096 = vdwg.mxu0
        %1097 = vmatprep.subr.mxu0 0.0
        %1098 = vmatpush1.msra.mxu0 %v622
        %1099 = vmatprep.subr.mxu0 0.0
        %1100 = vmatpush1.msra.mxu0 %v625
        %1101 = vmatprep.subr.mxu0 0.0
        %1102 = vmatpush1.msra.mxu0 %v628
        %1103 = vmatprep.subr.mxu0 0.0
        %1104 = vmatpush1.msra.mxu0 %v631
        %1105 = vmatprep.subr.mxu0 0.0
        %1106 = vmatpush1.msra.mxu0 %v634
        %1107 = vmatprep.subr.mxu0 0.0
        %1108 = vmatpush1.msra.mxu0 %v637
        %1109 = vmatprep.subr.mxu0 0.0
        %1110 = vmatpush1.msra.mxu0 %v640
        %1111 = vmatprep.subr.mxu0 0.0
        %1112 = vmatpush1.msra.mxu0 %v643
        %1113 = vmatprep.subr.mxu0 0.0
        %1114 = vmatpush1.msra.mxu0 %v646
        %1115 = vmatprep.subr.mxu0 0.0
        %1116 = vmatpush1.msra.mxu0 %v649
        %1117 = vmatprep.subr.mxu0 0.0
        %1118 = vmatpush1.msra.mxu0 %v652
        %1119 = vmatprep.subr.mxu0 0.0
        %1120 = vmatpush1.msra.mxu0 %v655
        %1121 = vmatprep.subr.mxu0 0.0
        %1122 = vmatpush1.msra.mxu0 %v658
        %1123 = vmatprep.subr.mxu0 0.0
        %1124 = vmatpush1.msra.mxu0 %v661
        %1125 = vmatprep.subr.mxu0 0.0
        %1126 = vmatpush1.msra.mxu0 %v664
        %1127 = vmatprep.subr.mxu0 0.0
        %1128 = vmatpush1.msra.mxu0 %v667
        %1129 = vmatprep.subr.mxu0 0.0
        %1130 = vmatpush1.msra.mxu0 %v670
        %1131 = vmatprep.subr.mxu0 0.0
        %1132 = vmatpush1.msra.mxu0 %v673
        %1133 = vmatprep.subr.mxu0 0.0
        %1134 = vmatpush1.msra.mxu0 %v676
        %1135 = vmatprep.subr.mxu0 0.0
        %1136 = vmatpush1.msra.mxu0 %v679
        %1137 = vmatprep.subr.mxu0 0.0
        %1138 = vmatpush1.msra.mxu0 %v682
        %1139 = vmatprep.subr.mxu0 0.0
        %1140 = vmatpush1.msra.mxu0 %v685
        %1141 = vmatprep.subr.mxu0 0.0
        %1142 = vmatpush1.msra.mxu0 %v688
        %1143 = vmatprep.subr.mxu0 0.0
        %1144 = vmatpush1.msra.mxu0 %v691
        %1145 = vmatprep.subr.mxu0 0.0
        %1146 = vmatpush1.msra.mxu0 %v694
        %1147 = vmatprep.subr.mxu0 0.0
        %1148 = vmatpush1.msra.mxu0 %v697
        %1149 = vmatprep.subr.mxu0 0.0
        %1150 = vmatpush1.msra.mxu0 %v700
        %1151 = vmatprep.subr.mxu0 0.0
        %1152 = vmatpush1.msra.mxu0 %v703
        %1153 = vmatprep.subr.mxu0 0.0
        %1154 = vmatpush1.msra.mxu0 %v706
        %1155 = vmatprep.subr.mxu0 0.0
        %1156 = vmatpush1.msra.mxu0 %v709
        %1157 = vmatprep.subr.mxu0 0.0
        %1158 = vmatpush1.msra.mxu0 %v712
        %1159 = vmatprep.subr.mxu0 0.0
        %1160 = vmatpush1.msra.mxu0 %v715
        %1161 = vmatprep.mubr.f32.mxu0 %v846
        %1162 = vmatmul.mubr.f32.gmra.mrb[0].mxu0 %v845
        %v1163 = vpop.f32.mrb[0].mxu0
        %v1164 = vadd.f32 0.0, %v1163
        %v1165 = vpop.f32.mrb[0].mxu0
        %1166 = vmatprep.mubr.f32.mxu0 %v850
        %1167 = vmatmul.mubr.f32.gmra.mrb[0].mxu0 %v849
        %v1168 = vpop.f32.mrb[0].mxu0
        %v1169 = vadd.f32 0.0, %v1168
        %v1170 = vpop.f32.mrb[0].mxu0
        %1171 = vdwg.mxu0
        %1172 = vmatprep.subr.mxu0 0.0
        %1173 = vmatpush1.msra.mxu0 %v718
        %1174 = vmatprep.subr.mxu0 0.0
        %1175 = vmatpush1.msra.mxu0 %v721
        %1176 = vmatprep.subr.mxu0 0.0
        %1177 = vmatpush1.msra.mxu0 %v724
        %1178 = vmatprep.subr.mxu0 0.0
        %1179 = vmatpush1.msra.mxu0 %v727
        %1180 = vmatprep.subr.mxu0 0.0
        %1181 = vmatpush1.msra.mxu0 %v730
        %1182 = vmatprep.subr.mxu0 0.0
        %1183 = vmatpush1.msra.mxu0 %v733
        %1184 = vmatprep.subr.mxu0 0.0
        %1185 = vmatpush1.msra.mxu0 %v736
        %1186 = vmatprep.subr.mxu0 0.0
        %1187 = vmatpush1.msra.mxu0 %v739
        %1188 = vmatprep.subr.mxu0 0.0
        %1189 = vmatpush1.msra.mxu0 %v742
        %1190 = vmatprep.subr.mxu0 0.0
        %1191 = vmatpush1.msra.mxu0 %v745
        %1192 = vmatprep.subr.mxu0 0.0
        %1193 = vmatpush1.msra.mxu0 %v748
        %1194 = vmatprep.subr.mxu0 0.0
        %1195 = vmatpush1.msra.mxu0 %v751
        %1196 = vmatprep.subr.mxu0 0.0
        %1197 = vmatpush1.msra.mxu0 %v754
        %1198 = vmatprep.subr.mxu0 0.0
        %1199 = vmatpush1.msra.mxu0 %v757
        %1200 = vmatprep.subr.mxu0 0.0
        %1201 = vmatpush1.msra.mxu0 %v760
        %1202 = vmatprep.subr.mxu0 0.0
        %1203 = vmatpush1.msra.mxu0 %v763
        %1204 = vmatprep.subr.mxu0 0.0
        %1205 = vmatpush1.msra.mxu0 %v766
        %1206 = vmatprep.subr.mxu0 0.0
        %1207 = vmatpush1.msra.mxu0 %v769
        %1208 = vmatprep.subr.mxu0 0.0
        %1209 = vmatpush1.msra.mxu0 %v772
        %1210 = vmatprep.subr.mxu0 0.0
        %1211 = vmatpush1.msra.mxu0 %v775
        %1212 = vmatprep.subr.mxu0 0.0
        %1213 = vmatpush1.msra.mxu0 %v778
        %1214 = vmatprep.subr.mxu0 0.0
        %1215 = vmatpush1.msra.mxu0 %v781
        %1216 = vmatprep.subr.mxu0 0.0
        %1217 = vmatpush1.msra.mxu0 %v784
        %1218 = vmatprep.subr.mxu0 0.0
        %1219 = vmatpush1.msra.mxu0 %v787
        %1220 = vmatprep.subr.mxu0 0.0
        %1221 = vmatpush1.msra.mxu0 %v790
        %1222 = vmatprep.subr.mxu0 0.0
        %1223 = vmatpush1.msra.mxu0 %v793
        %1224 = vmatprep.subr.mxu0 0.0
        %1225 = vmatpush1.msra.mxu0 %v796
        %1226 = vmatprep.subr.mxu0 0.0
        %1227 = vmatpush1.msra.mxu0 %v799
        %1228 = vmatprep.subr.mxu0 0.0
        %1229 = vmatpush1.msra.mxu0 %v802
        %1230 = vmatprep.subr.mxu0 0.0
        %1231 = vmatpush1.msra.mxu0 %v805
        %1232 = vmatprep.subr.mxu0 0.0
        %1233 = vmatpush1.msra.mxu0 %v808
        %1234 = vmatprep.subr.mxu0 0.0
        %1235 = vmatpush1.msra.mxu0 %v811
        %1236 = vmatprep.mubr.f32.mxu0 %v848
        %1237 = vmatmul.mubr.f32.gmra.mrb[0].mxu0 %v847
        %v1238 = vpop.f32.mrb[0].mxu0
        %v1239 = vadd.f32 %v1164, %v1238
        %v1240 = vpop.f32.mrb[0].mxu0
        %1241 = vmatprep.mubr.f32.mxu0 %v852
        %1242 = vmatmul.mubr.f32.gmra.mrb[0].mxu0 %v851
        %v1243 = vpop.f32.mrb[0].mxu0
        %v1244 = vadd.f32 %v1169, %v1243
        %v1245 = vpop.f32.mrb[0].mxu0
        %1246 = vdwg.mxu0
        %1247 = vmatprep.subr.mxu0 0.0
        %1248 = vmatpush1.msra.mxu0 %v814
        %1249 = vmatprep.subr.mxu0 0.0
        %1250 = vmatpush1.msra.mxu0 0.0
        %1251 = vmatprep.subr.mxu0 0.0
        %1252 = vmatpush1.msra.mxu0 0.0
        %1253 = vmatprep.subr.mxu0 0.0
        %1254 = vmatpush1.msra.mxu0 0.0
        %1255 = vmatprep.subr.mxu0 0.0
        %1256 = vmatpush1.msra.mxu0 0.0
        %1257 = vmatprep.subr.mxu0 0.0
        %1258 = vmatpush1.msra.mxu0 0.0
        %1259 = vmatprep.subr.mxu0 0.0
        %1260 = vmatpush1.msra.mxu0 0.0
        %1261 = vmatprep.subr.mxu0 0.0
        %1262 = vmatpush1.msra.mxu0 0.0
        %1263 = vmatprep.subr.mxu0 0.0
        %1264 = vmatpush1.msra.mxu0 0.0
        %1265 = vmatprep.subr.mxu0 0.0
        %1266 = vmatpush1.msra.mxu0 0.0
        %1267 = vmatprep.subr.mxu0 0.0
        %1268 = vmatpush1.msra.mxu0 0.0
        %1269 = vmatprep.subr.mxu0 0.0
        %1270 = vmatpush1.msra.mxu0 0.0
        %1271 = vmatprep.subr.mxu0 0.0
        %1272 = vmatpush1.msra.mxu0 0.0
        %1273 = vmatprep.subr.mxu0 0.0
        %1274 = vmatpush1.msra.mxu0 0.0
        %1275 = vmatprep.subr.mxu0 0.0
        %1276 = vmatpush1.msra.mxu0 0.0
        %1277 = vmatprep.subr.mxu0 0.0
        %1278 = vmatpush1.msra.mxu0 0.0
        %1279 = vmatprep.subr.mxu0 0.0
        %1280 = vmatpush1.msra.mxu0 0.0
        %1281 = vmatprep.subr.mxu0 0.0
        %1282 = vmatpush1.msra.mxu0 0.0
        %1283 = vmatprep.subr.mxu0 0.0
        %1284 = vmatpush1.msra.mxu0 0.0
        %1285 = vmatprep.subr.mxu0 0.0
        %1286 = vmatpush1.msra.mxu0 0.0
        %1287 = vmatprep.subr.mxu0 0.0
        %1288 = vmatpush1.msra.mxu0 0.0
        %1289 = vmatprep.subr.mxu0 0.0
        %1290 = vmatpush1.msra.mxu0 0.0
        %1291 = vmatprep.subr.mxu0 0.0
        %1292 = vmatpush1.msra.mxu0 0.0
        %1293 = vmatprep.subr.mxu0 0.0
        %1294 = vmatpush1.msra.mxu0 0.0
        %1295 = vmatprep.subr.mxu0 0.0
        %1296 = vmatpush1.msra.mxu0 0.0
        %1297 = vmatprep.subr.mxu0 0.0
        %1298 = vmatpush1.msra.mxu0 0.0
        %1299 = vmatprep.subr.mxu0 0.0
        %1300 = vmatpush1.msra.mxu0 0.0
        %1301 = vmatprep.subr.mxu0 0.0
        %1302 = vmatpush1.msra.mxu0 0.0
        %1303 = vmatprep.subr.mxu0 0.0
        %1304 = vmatpush1.msra.mxu0 0.0
        %1305 = vmatprep.subr.mxu0 0.0
        %1306 = vmatpush1.msra.mxu0 0.0
        %1307 = vmatprep.subr.mxu0 0.0
        %1308 = vmatpush1.msra.mxu0 0.0
        %1309 = vmatprep.subr.mxu0 0.0
        %1310 = vmatpush1.msra.mxu0 0.0
        %1311 = vmatprep.mubr.f32.mxu0 0.0
        %1312 = vmatmul.mubr.f32.gmra.mrb[0].mxu0 %v862
        %v1313 = vpop.f32.mrb[0].mxu0
        %v1314 = vadd.f32 %v1239, %v1313
        %v1315 = vpop.f32.mrb[0].mxu0
        %1316 = vmatprep.mubr.f32.mxu0 0.0
        %1317 = vmatmul.mubr.f32.gmra.mrb[0].mxu0 %v864
        %v1318 = vpop.f32.mrb[0].mxu0
        %v1319 = vadd.f32 %v1244, %v1318
        %v1320 = vpop.f32.mrb[0].mxu0
        %1321 = vdwg.mxu0
        %v1322 = vlaneseq
        %v1323 = vand.u32 %v1322, 127
        %v1324 = vadd.s32 %v1323, 128
        %v1325 = vadd.s32 %v1323, 256
        %s1326 = smul.u32 %s24, 256
        %s1327 = ssub.s32 %s1326, 1
        %v1328 = vstv %s1327
        %v1329 = vadd.s32 %v1323, %v1328
        %v1330 = vadd.s32 %v1324, %v1328
        %v1331 = vadd.s32 %v1325, %v1328
        %vm1332 = vcmp.ge.s32.totalorder %v1329, 0
        %vm1333 = vcmp.ge.s32.totalorder %v1330, 0
        %vm1334 = vcmp.ge.s32.totalorder %v1331, 0
        %vm1335 = vcmp.lt.s32.totalorder %v1329, 512
        %vm1336 = vcmp.lt.s32.totalorder %v1330, 512
        %vm1337 = vcmp.lt.s32.totalorder %v1331, 512
        %vm1338 = vmand %vm1332, %vm1335
        %vm1339 = vmand %vm1333, %vm1336
        %vm1340 = vmand %vm1334, %vm1337
        %v1341 = vsel %vm1338, 1, 0
        %v1342 = vsel %vm1339, 1, 0
        %v1343 = vsel %vm1340, 1, 0
        %v1344 = vcvt.s32.f32 %v1341
        %v1345 = vcvt.s32.f32 %v1342
        %v1346 = vcvt.s32.f32 %v1343
        %v1347 = vmul.f32 %v1087, %v1344
        %v1348 = vmul.f32 %v1089, %v1345
        %v1349 = vmul.f32 %v1314, %v1346
        %v1350 = vmul.f32 %v1093, %v1344
        %v1351 = vmul.f32 %v1095, %v1345
        %v1352 = vmul.f32 %v1319, %v1346
        %v1353 = vld [vmem:[%s2] sm:$0xff]
        %v1354 = vld [vmem:[%s2 + $0x8] sm:$0xff]
        %v1355 = vld [vmem:[%s2 + $0x10] sm:$0xff]
        %v1356 = vld [vmem:[%s2 + $0x18] sm:$0xff]
        %vm1357 = vcmask 1047568
        %1358 = vrot.lane.b32.xlu0 %v1347, 2
        %v1359 = vpop.permute.xlu0 %1358
        %1360 = vrot.lane.b32.xlu0 %v1350, 2
        %v1361 = vpop.permute.xlu0 %1360
        %v1362 = vsel %vm1357, %v1359, %v1349
        %v1363 = vsel %vm1357, %v1361, %v1352
        %1370 = vrot.lane.b32.xlu0 %v1347, 127
        %v1371 = vpop.permute.xlu0 %1370
        %1372 = vrot.lane.b32.xlu0 %v1348, 127
        %v1373 = vpop.permute.xlu0 %1372
        %1374 = vrot.lane.b32.xlu0 %v1362, 127
        %v1375 = vpop.permute.xlu0 %1374
        %1376 = vrot.lane.b32.xlu0 %v1350, 127
        %v1377 = vpop.permute.xlu0 %1376
        %1378 = vrot.lane.b32.xlu0 %v1351, 127
        %v1379 = vpop.permute.xlu0 %1378
        %1380 = vrot.lane.b32.xlu0 %v1363, 127
        %v1381 = vpop.permute.xlu0 %1380
        %vm1382 = vcmask 1039360
        %v1383 = vsel %vm1382, %v1371, %v1373
        %v1384 = vsel %vm1382, %v1373, %v1375
        %v1385 = vsel %vm1382, %v1377, %v1379
        %v1386 = vsel %vm1382, %v1379, %v1381
        %1391 = vrot.lane.b32.xlu0 %v1347, 126
        %v1392 = vpop.permute.xlu0 %1391
        %1393 = vrot.lane.b32.xlu0 %v1348, 126
        %v1394 = vpop.permute.xlu0 %1393
        %1395 = vrot.lane.b32.xlu0 %v1362, 126
        %v1396 = vpop.permute.xlu0 %1395
        %1397 = vrot.lane.b32.xlu0 %v1350, 126
        %v1398 = vpop.permute.xlu0 %1397
        %1399 = vrot.lane.b32.xlu0 %v1351, 126
        %v1400 = vpop.permute.xlu0 %1399
        %1401 = vrot.lane.b32.xlu0 %v1363, 126
        %v1402 = vpop.permute.xlu0 %1401
        %vm1403 = vcmask 1031168
        %v1404 = vsel %vm1403, %v1392, %v1394
        %v1405 = vsel %vm1403, %v1394, %v1396
        %v1406 = vsel %vm1403, %v1398, %v1400
        %v1407 = vsel %vm1403, %v1400, %v1402
        %1413 = vset.pattern.permute.xlu0 48
        %1414 = vperm.xlu0 %1413, %v1353
        %v1415 = vpop.permute.xlu0 %1414
        %1418 = vset.pattern.permute.xlu0 48
        %1419 = vperm.xlu0 %1418, %v1354
        %v1420 = vpop.permute.xlu0 %1419
        %1423 = vset.pattern.permute.xlu0 48
        %1424 = vperm.xlu0 %1423, %v1355
        %v1425 = vpop.permute.xlu0 %1424
        %1428 = vset.pattern.permute.xlu0 48
        %1429 = vperm.xlu0 %1428, %v1356
        %v1430 = vpop.permute.xlu0 %1429
        %vm1432 = vcmask 392192
        %v1433 = vsel %vm1432, %v1353, 0
        %v1435 = vsel %vm1432, %v1354, 0
        %v1437 = vsel %vm1432, %v1355, 0
        %v1439 = vsel %vm1432, %v1356, 0
        %1441 = vmatprep.subr.mxu0 %v1348
        %1442 = vmatpush1.msra.mxu0 %v1347
        %1443 = vmatprep.subr.mxu0 %v1351
        %1444 = vmatpush1.msra.mxu0 %v1350
        %1445 = vmatprep.subr.mxu0 %v1384
        %1446 = vmatpush1.msra.mxu0 %v1383
        %1447 = vmatprep.subr.mxu0 %v1386
        %1448 = vmatpush1.msra.mxu0 %v1385
        %1449 = vmatprep.subr.mxu0 %v1405
        %1450 = vmatpush1.msra.mxu0 %v1404
        %1451 = vmatprep.subr.mxu0 %v1407
        %1452 = vmatpush1.msra.mxu0 %v1406
        %1453 = vmatprep.subr.mxu0 0.0
        %1454 = vmatpush1.msra.mxu0 0.0
        %1455 = vmatprep.subr.mxu0 0.0
        %1456 = vmatpush1.msra.mxu0 0.0
        %1457 = vmatprep.subr.mxu0 0.0
        %1458 = vmatpush1.msra.mxu0 0.0
        %1459 = vmatprep.subr.mxu0 0.0
        %1460 = vmatpush1.msra.mxu0 0.0
        %1461 = vmatprep.subr.mxu0 0.0
        %1462 = vmatpush1.msra.mxu0 0.0
        %1463 = vmatprep.subr.mxu0 0.0
        %1464 = vmatpush1.msra.mxu0 0.0
        %1465 = vmatprep.subr.mxu0 0.0
        %1466 = vmatpush1.msra.mxu0 0.0
        %1467 = vmatprep.subr.mxu0 0.0
        %1468 = vmatpush1.msra.mxu0 0.0
        %1469 = vmatprep.subr.mxu0 0.0
        %1470 = vmatpush1.msra.mxu0 0.0
        %1471 = vmatprep.subr.mxu0 0.0
        %1472 = vmatpush1.msra.mxu0 0.0
        %1473 = vmatprep.subr.mxu0 0.0
        %1474 = vmatpush1.msra.mxu0 0.0
        %1475 = vmatprep.subr.mxu0 0.0
        %1476 = vmatpush1.msra.mxu0 0.0
        %1477 = vmatprep.subr.mxu0 0.0
        %1478 = vmatpush1.msra.mxu0 0.0
        %1479 = vmatprep.subr.mxu0 0.0
        %1480 = vmatpush1.msra.mxu0 0.0
        %1481 = vmatprep.subr.mxu0 0.0
        %1482 = vmatpush1.msra.mxu0 0.0
        %1483 = vmatprep.subr.mxu0 0.0
        %1484 = vmatpush1.msra.mxu0 0.0
        %1485 = vmatprep.subr.mxu0 0.0
        %1486 = vmatpush1.msra.mxu0 0.0
        %1487 = vmatprep.subr.mxu0 0.0
        %1488 = vmatpush1.msra.mxu0 0.0
        %1489 = vmatprep.subr.mxu0 0.0
        %1490 = vmatpush1.msra.mxu0 0.0
        %1491 = vmatprep.subr.mxu0 0.0
        %1492 = vmatpush1.msra.mxu0 0.0
        %1493 = vmatprep.subr.mxu0 0.0
        %1494 = vmatpush1.msra.mxu0 0.0
        %1495 = vmatprep.subr.mxu0 0.0
        %1496 = vmatpush1.msra.mxu0 0.0
        %1497 = vmatprep.subr.mxu0 0.0
        %1498 = vmatpush1.msra.mxu0 0.0
        %1499 = vmatprep.subr.mxu0 0.0
        %1500 = vmatpush1.msra.mxu0 0.0
        %1501 = vmatprep.subr.mxu0 0.0
        %1502 = vmatpush1.msra.mxu0 0.0
        %1503 = vmatprep.subr.mxu0 0.0
        %1504 = vmatpush1.msra.mxu0 0.0
        %1505 = vmatprep.mubr.f32.mxu0 0.0
        %1506 = vmatmul.mubr.f32.gmra.mrb[0].mxu0 %v1433
        %v1507 = vpop.f32.mrb[0].mxu0
        %v1508 = vadd.f32 %v1415, %v1507
        %v1509 = vpop.f32.mrb[0].mxu0
        %v1510 = vadd.f32 %v1415, %v1509
        %1511 = vmatprep.mubr.f32.mxu0 0.0
        %1512 = vmatmul.mubr.f32.gmra.mrb[0].mxu0 %v1435
        %v1513 = vpop.f32.mrb[0].mxu0
        %v1514 = vadd.f32 %v1420, %v1513
        %v1515 = vpop.f32.mrb[0].mxu0
        %v1516 = vadd.f32 %v1420, %v1515
        %1517 = vmatprep.mubr.f32.mxu0 0.0
        %1518 = vmatmul.mubr.f32.gmra.mrb[0].mxu0 %v1437
        %v1519 = vpop.f32.mrb[0].mxu0
        %v1520 = vadd.f32 %v1425, %v1519
        %v1521 = vpop.f32.mrb[0].mxu0
        %v1522 = vadd.f32 %v1425, %v1521
        %1523 = vmatprep.mubr.f32.mxu0 0.0
        %1524 = vmatmul.mubr.f32.gmra.mrb[0].mxu0 %v1439
        %v1525 = vpop.f32.mrb[0].mxu0
        %v1526 = vadd.f32 %v1430, %v1525
        %v1527 = vpop.f32.mrb[0].mxu0
        %v1528 = vadd.f32 %v1430, %v1527
        %1529 = vdwg.mxu0
        %v1530 = vmax.f32 %v1508, 0.0
        %v1531 = vmax.f32 %v1510, 0.0
        %v1532 = vmax.f32 %v1514, 0.0
        %v1533 = vmax.f32 %v1516, 0.0
        %v1534 = vmax.f32 %v1520, 0.0
        %v1535 = vmax.f32 %v1522, 0.0
        %v1536 = vmax.f32 %v1526, 0.0
        %v1537 = vmax.f32 %v1528, 0.0
        %1538 = vrot.lane.b32.xlu0 %v1530, 127
        %v1539 = vpop.permute.xlu0 %1538
        %1540 = vrot.lane.b32.xlu0 %v1532, 127
        %v1541 = vpop.permute.xlu0 %1540
        %1542 = vrot.lane.b32.xlu0 %v1534, 127
        %v1543 = vpop.permute.xlu0 %1542
        %1544 = vrot.lane.b32.xlu0 %v1536, 127
        %v1545 = vpop.permute.xlu0 %1544
        %1546 = vrot.lane.b32.xlu0 %v1531, 127
        %v1547 = vpop.permute.xlu0 %1546
        %1548 = vrot.lane.b32.xlu0 %v1533, 127
        %v1549 = vpop.permute.xlu0 %1548
        %1550 = vrot.lane.b32.xlu0 %v1535, 127
        %v1551 = vpop.permute.xlu0 %1550
        %1552 = vrot.lane.b32.xlu0 %v1537, 127
        %v1553 = vpop.permute.xlu0 %1552
        %vm1554 = vcmp.lt.s32.totalorder %v1323, 127
        %v1555 = vsel %vm1554, %v1539, %v1547
        %v1556 = vsel %vm1554, %v1541, %v1549
        %v1557 = vsel %vm1554, %v1543, %v1551
        %v1558 = vsel %vm1554, %v1545, %v1553
        %v1559 = vsel %vm1554, %v1547, %v1539
        %v1560 = vsel %vm1554, %v1549, %v1541
        %v1561 = vsel %vm1554, %v1551, %v1543
        %v1562 = vsel %vm1554, %v1553, %v1545
        %v1563 = vmax.f32 %v1530, %v1555
        %v1564 = vmax.f32 %v1531, %v1559
        %v1565 = vmax.f32 %v1532, %v1556
        %v1566 = vmax.f32 %v1533, %v1560
        %v1567 = vmax.f32 %v1534, %v1557
        %v1568 = vmax.f32 %v1535, %v1561
        %v1569 = vmax.f32 %v1536, %v1558
        %v1570 = vmax.f32 %v1537, %v1562
        %v1571 = vld [vmem:[%s4] sm:$0xff]
        %v1572 = vld [vmem:[%s4 + $0x8] sm:$0xff]
        %v1573 = vld [vmem:[%s4 + $0x10] sm:$0xff]
        %v1574 = vld [vmem:[%s4 + $0x18] sm:$0xff]
        %v1575 = vld [vmem:[%s4 + $0x20] sm:$0xff]
        %v1576 = vld [vmem:[%s4 + $0x28] sm:$0xff]
        %v1577 = vld [vmem:[%s4 + $0x30] sm:$0xff]
        %v1578 = vld [vmem:[%s4 + $0x38] sm:$0xff]
        %v1579 = vld [vmem:[%s4 + $0x40] sm:$0xff]
        %v1580 = vld [vmem:[%s4 + $0x48] sm:$0xff]
        %v1581 = vld [vmem:[%s4 + $0x50] sm:$0xff]
        %v1582 = vld [vmem:[%s4 + $0x58] sm:$0xff]
        %v1583 = vld [vmem:[%s4 + $0x60] sm:$0xff]
        %v1584 = vld [vmem:[%s4 + $0x68] sm:$0xff]
        %v1585 = vld [vmem:[%s4 + $0x70] sm:$0xff]
        %v1586 = vld [vmem:[%s4 + $0x78] sm:$0xff]
        %v1587 = vld [vmem:[%s4 + $0x80] sm:$0xff]
        %v1588 = vld [vmem:[%s4 + $0x88] sm:$0xff]
        %v1589 = vld [vmem:[%s4 + $0x90] sm:$0xff]
        %v1590 = vld [vmem:[%s4 + $0x98] sm:$0xff]
        %v1591 = vld [vmem:[%s4 + $0xa0] sm:$0xff]
        %v1592 = vld [vmem:[%s4 + $0xa8] sm:$0xff]
        %v1593 = vld [vmem:[%s4 + $0xb0] sm:$0xff]
        %v1594 = vld [vmem:[%s4 + $0xb8] sm:$0xff]
        %v1595 = vld [vmem:[%s4 + $0xc0] sm:$0xff]
        %v1596 = vld [vmem:[%s4 + $0xc8] sm:$0xff]
        %v1597 = vld [vmem:[%s4 + $0xd0] sm:$0xff]
        %v1598 = vld [vmem:[%s4 + $0xd8] sm:$0xff]
        %v1599 = vld [vmem:[%s4 + $0xe0] sm:$0xff]
        %v1600 = vld [vmem:[%s4 + $0xe8] sm:$0xff]
        %v1601 = vld [vmem:[%s4 + $0xf0] sm:$0xff]
        %v1602 = vld [vmem:[%s4 + $0xf8] sm:$0xff]
        %1603 = vmatprep.subr.mxu0 0.0
        %1604 = vmatpush1.msra.mxu0 %v1571
        %1605 = vmatprep.subr.mxu0 0.0
        %1606 = vmatpush1.msra.mxu0 %v1572
        %1607 = vmatprep.subr.mxu0 0.0
        %1608 = vmatpush1.msra.mxu0 %v1573
        %1609 = vmatprep.subr.mxu0 0.0
        %1610 = vmatpush1.msra.mxu0 %v1574
        %1611 = vmatprep.subr.mxu0 0.0
        %1612 = vmatpush1.msra.mxu0 %v1575
        %1613 = vmatprep.subr.mxu0 0.0
        %1614 = vmatpush1.msra.mxu0 %v1576
        %1615 = vmatprep.subr.mxu0 0.0
        %1616 = vmatpush1.msra.mxu0 %v1577
        %1617 = vmatprep.subr.mxu0 0.0
        %1618 = vmatpush1.msra.mxu0 %v1578
        %1619 = vmatprep.subr.mxu0 0.0
        %1620 = vmatpush1.msra.mxu0 %v1579
        %1621 = vmatprep.subr.mxu0 0.0
        %1622 = vmatpush1.msra.mxu0 %v1580
        %1623 = vmatprep.subr.mxu0 0.0
        %1624 = vmatpush1.msra.mxu0 %v1581
        %1625 = vmatprep.subr.mxu0 0.0
        %1626 = vmatpush1.msra.mxu0 %v1582
        %1627 = vmatprep.subr.mxu0 0.0
        %1628 = vmatpush1.msra.mxu0 %v1583
        %1629 = vmatprep.subr.mxu0 0.0
        %1630 = vmatpush1.msra.mxu0 %v1584
        %1631 = vmatprep.subr.mxu0 0.0
        %1632 = vmatpush1.msra.mxu0 %v1585
        %1633 = vmatprep.subr.mxu0 0.0
        %1634 = vmatpush1.msra.mxu0 %v1586
        %1635 = vmatprep.subr.mxu0 0.0
        %1636 = vmatpush1.msra.mxu0 %v1587
        %1637 = vmatprep.subr.mxu0 0.0
        %1638 = vmatpush1.msra.mxu0 %v1588
        %1639 = vmatprep.subr.mxu0 0.0
        %1640 = vmatpush1.msra.mxu0 %v1589
        %1641 = vmatprep.subr.mxu0 0.0
        %1642 = vmatpush1.msra.mxu0 %v1590
        %1643 = vmatprep.subr.mxu0 0.0
        %1644 = vmatpush1.msra.mxu0 %v1591
        %1645 = vmatprep.subr.mxu0 0.0
        %1646 = vmatpush1.msra.mxu0 %v1592
        %1647 = vmatprep.subr.mxu0 0.0
        %1648 = vmatpush1.msra.mxu0 %v1593
        %1649 = vmatprep.subr.mxu0 0.0
        %1650 = vmatpush1.msra.mxu0 %v1594
        %1651 = vmatprep.subr.mxu0 0.0
        %1652 = vmatpush1.msra.mxu0 %v1595
        %1653 = vmatprep.subr.mxu0 0.0
        %1654 = vmatpush1.msra.mxu0 %v1596
        %1655 = vmatprep.subr.mxu0 0.0
        %1656 = vmatpush1.msra.mxu0 %v1597
        %1657 = vmatprep.subr.mxu0 0.0
        %1658 = vmatpush1.msra.mxu0 %v1598
        %1659 = vmatprep.subr.mxu0 0.0
        %1660 = vmatpush1.msra.mxu0 %v1599
        %1661 = vmatprep.subr.mxu0 0.0
        %1662 = vmatpush1.msra.mxu0 %v1600
        %1663 = vmatprep.subr.mxu0 0.0
        %1664 = vmatpush1.msra.mxu0 %v1601
        %1665 = vmatprep.subr.mxu0 0.0
        %1666 = vmatpush1.msra.mxu0 %v1602
        %1667 = vmatprep.mubr.f32.mxu0 %v1564
        %1668 = vmatmul.mubr.f32.gmra.mrb[0].mxu0 %v1563
        %v1669 = vpop.f32.mrb[0].mxu0
        %v1670 = vadd.f32 0.0, %v1669
        %v1671 = vpop.f32.mrb[0].mxu0
        %1672 = vmatprep.mubr.f32.mxu0 %v1566
        %1673 = vmatmul.mubr.f32.gmra.mrb[0].mxu0 %v1565
        %v1674 = vpop.f32.mrb[0].mxu0
        %v1675 = vadd.f32 0.0, %v1674
        %v1676 = vpop.f32.mrb[0].mxu0
        %1677 = vmatprep.mubr.f32.mxu0 %v1568
        %1678 = vmatmul.mubr.f32.gmra.mrb[0].mxu0 %v1567
        %v1679 = vpop.f32.mrb[0].mxu0
        %v1680 = vadd.f32 0.0, %v1679
        %v1681 = vpop.f32.mrb[0].mxu0
        %1682 = vmatprep.mubr.f32.mxu0 %v1570
        %1683 = vmatmul.mubr.f32.gmra.mrb[0].mxu0 %v1569
        %v1684 = vpop.f32.mrb[0].mxu0
        %v1685 = vadd.f32 0.0, %v1684
        %v1686 = vpop.f32.mrb[0].mxu0
        %1687 = vdwg.mxu0
        %1688 = vst [vmem:[%s229] sm:$0xff] %v1670
        %1689 = vst [vmem:[%s229 + $0x8] sm:$0xff] %v1675
        %1690 = vst [vmem:[%s229 + $0x10] sm:$0xff] %v1680
        %1691 = vst [vmem:[%s229 + $0x18] sm:$0xff] %v1685
        %s1692 = sand.u32 %s151, 1
        %s1693 = scalar_lea.sflag [#allocation3], %s1692
        %s1694 = sand.u32 %s151, 1
        %s1695 = smul.addr %s1694, 32
        %s1696 = scalar_lea.vmem [#allocation2], %s1695
        // Predicated region
        $region41: #{tpu_custom_call.1} parent=39 // pred_check
          %p1697 = pneg %p161
        $region42: #{tpu_custom_call.1} parent=39 // pred_check_branch
          %1699 = sbr.rel (%p1697) target = $region44
        $region43: #{tpu_custom_call.1} parent=39 // pred_region
          %s1701 = ssub.s32 512, 512
          %1702 = vsyncadd %s1693, %s1701
          %s1703 = smul.addr %s23, 8
          %s1704 = sadd.s32 %s24, %s1703
          %s1705 = smul.addr %s1704, 128
          %s1706 = scalar_lea.hbm %s5, %s1705
          %s1707 = sshll.u32 %s1696, 4
          %s1708 = int_to_ptr.vmem [resolvable:$true] %s1707
          %1713 = dma.vmem_to_hbm [thread:$0]  %s1708, 512, %s1706, %s1693, 128, 256, 8
        $region44: #{tpu_custom_call.1} parent=39 // pred_fallthru
          _
      $region40: #{tpu_custom_call.1} parent=5 // pred_fallthru
        _
      %p1714 = scmp.le.s32.totalorder 2, %s14
      // Predicated region
      $region45: #{tpu_custom_call.1} parent=5 // pred_check
        %p1715 = pneg %p1714
      $region46: #{tpu_custom_call.1} parent=5 // pred_check_branch
        %1717 = sbr.rel (%p1715) target = $region48
      $region47: #{tpu_custom_call.1} parent=5 // pred_region
        %s1718 = ssub.s32 %s14, 2
        // Predicated region
        $region49: #{tpu_custom_call.1} parent=47 // pred_check
          %p1719 = pneg %p167
        $region50: #{tpu_custom_call.1} parent=47 // pred_check_branch
          %1721 = sbr.rel (%p1719) target = $region52
        $region51: #{tpu_custom_call.1} parent=47 // pred_region
          %s1722 = sand.u32 %s152, 1
          %s1723 = scalar_lea.sflag [#allocation3], %s1722
          %s1724 = sand.u32 %s152, 1
          %s1725 = smul.addr %s1724, 32
          %s1726 = scalar_lea.vmem [#allocation2], %s1725
          %1727 = dma.done %s1723, 512
        $region52: #{tpu_custom_call.1} parent=47 // pred_fallthru
          _
      $region48: #{tpu_custom_call.1} parent=5 // pred_fallthru
        _
    $region6: #{tpu_custom_call.1} parent=1 // loop_footer
      %s18 = sadd.s32 1, %s14
    $region7: #{tpu_custom_call.1} parent=1 // loop_footer_branch
      %13 = sbr.rel target = $region3
    $region8: #{tpu_custom_call.1} parent=1 // loop_exit
      _
    %1728 = vsyncpa [#allocation3], 1
    %s1729 = scalar_lea.sflag [#allocation3], 1
    %1730 = vsyncpa %s1729, 1

</llo_original>
